<compile_context>
chip_gen: v7x
topology: tpu7x:2x2x1
jax: 0.10.0
libtpu: 0.0.40
codegen_flags: <defaults>
</compile_context>

<pallas_src>
import jax
import jax.numpy as jnp
from jax import lax
from jax.experimental import pallas as pl
from jax.experimental.pallas import tpu as pltpu

LANE = 128
_VMEM_CAP_CACHE = [None]


def _round_up(x, m):
    return ((x + m - 1) // m) * m


def _pad2d(a, rows, cols, dtype=None):
    out = jnp.zeros((rows, cols), a.dtype if dtype is None else dtype)
    return out.at[: a.shape[0], : a.shape[1]].set(a.astype(out.dtype))


def _vmem_capacity_bytes():
    if _VMEM_CAP_CACHE[0] is None:
        try:
            cap = int(pltpu.get_tpu_info().vmem_capacity_bytes)
        except Exception:
            cap = 64 * 1024 * 1024   # conservative fallback (smallest gen: v7x per-TC)
        _VMEM_CAP_CACHE[0] = cap
    return _VMEM_CAP_CACHE[0]


def _compiler_params(semantics, est_vmem_bytes):
    cap = _vmem_capacity_bytes()
    ceiling = max(cap - 12 * 1024 * 1024, 16 * 1024 * 1024)   # headroom for compiler scratch
    want = max(est_vmem_bytes * 5 // 4, 32 * 1024 * 1024)
    limit = int(min(want, ceiling))
    return pltpu.CompilerParams(dimension_semantics=semantics,
                                vmem_limit_bytes=limit)


def _pick_row_tile(n_pad, hin_pad, row_tile=None):
    cap = _vmem_capacity_bytes()
    max_tile = row_tile if row_tile is not None else (1024 if cap >= 96 * 1024 * 1024 else 512)
    max_tile = max(max_tile, LANE)
    tile = LANE
    for t in (1024, 512, 256, 128):
        if t <= max_tile and n_pad % t == 0:
            tile = t
            break
    # shrink if the per-step working set would blow the VMEM budget
    budget = max(cap - 16 * 1024 * 1024, 16 * 1024 * 1024)
    while tile > LANE:
        est = (2 * tile * n_pad            # double-buffered int8 row stripe
               + 2 * n_pad * hin_pad * 2   # resident bf16 features (double-buffered)
               + 2 * tile * hin_pad * 2)   # output tile
        if est <= budget:
            break
        tile //= 2
    return tile


# ---------------------------------------------------------------------------
# Kernels
# ---------------------------------------------------------------------------
def gcn_layer_kernel(a_ref, g_ref, w_ref, b_ref, dinv_ref, o_ref):
    """GCNConv + ReLU on one (tile, n_pad) row block of the integer (A~+I).

    a_ref:    (tile, n_pad) int8 streamed un-normalized adjacency row tile.
    g_ref:    (n_pad, Hin)  bf16 D^-1/2-pre-scaled node features (VMEM resident).
    w_ref:    (Hin, Hout)   bf16 weights;  b_ref: (1, Hout) f32 bias.
    dinv_ref: (tile, 1)     f32 d^-1/2 for this row tile.
    o_ref:    (tile, Hout)  bf16 output, pre-scaled by d^-1/2 for the next layer.
    """
    a = a_ref[...].astype(jnp.bfloat16)
    agg = jnp.dot(a, g_ref[...], preferred_element_type=jnp.float32)          # (A~+I) @ (D^-1/2 H)
    z = dinv_ref[...] * jnp.dot(agg.astype(jnp.bfloat16), w_ref[...],
                                preferred_element_type=jnp.float32) + b_ref[...]
    h = jnp.maximum(z, 0.0)                                                   # ReLU (dropout = identity)
    o_ref[...] = (h * dinv_ref[...]).astype(o_ref.dtype)                      # pre-scale for next layer


def gcn_layer3_pool_linear_kernel(a_ref, g_ref, w_ref, b_ref, dinv_ref,
                                  p_ref, wl_ref, bl_ref, o_ref, acc_ref):
    """GCNConv3 + ReLU + global_mean_pool + final Linear, fused over node tiles.

    p_ref:  (Bpad, tile) f32 mean-pool matrix columns for this node tile.
    wl_ref: (Hout, Opad) f32 final linear weight; bl_ref: (1, Opad) f32 bias.
    o_ref:  (Bpad, Opad) f32 lane-dense output (constant block index).
    acc_ref:(Bpad, Hout) f32 VMEM pooled accumulator.
    """
    i = pl.program_id(0)

    @pl.when(i == 0)
    def _init():
        acc_ref[...] = jnp.zeros_like(acc_ref)

    a = a_ref[...].astype(jnp.bfloat16)
    agg = jnp.dot(a, g_ref[...], preferred_element_type=jnp.float32)
    z = dinv_ref[...] * jnp.dot(agg.astype(jnp.bfloat16), w_ref[...],
                                preferred_element_type=jnp.float32) + b_ref[...]
    h3 = jnp.maximum(z, 0.0)                                                  # (tile, Hout) f32
    acc_ref[...] += jnp.dot(p_ref[...], h3, preferred_element_type=jnp.float32)

    @pl.when(i == pl.num_programs(0) - 1)
    def _finalize():
        o_ref[...] = jnp.dot(acc_ref[...], wl_ref[...],
                             preferred_element_type=jnp.float32) + bl_ref[...]


# ---------------------------------------------------------------------------
# pallas_call wrappers
# ---------------------------------------------------------------------------
def _gcn_layer_call(a_i8, g_bf16, w_bf16, b_f32, dinv_col, tile):
    n_pad = a_i8.shape[0]
    hin = g_bf16.shape[1]
    hout = w_bf16.shape[1]
    grid = (n_pad // tile,)

    # constant-index inputs are still double-buffered by the pipeline -> count 2x
    est_vmem = (2 * tile * n_pad * 1
                + 2 * n_pad * hin * 2
                + 2 * (hin * hout * 2 + hout * 4 + tile * 4)
                + 2 * tile * hout * 2)
    flops = 2 * n_pad * n_pad * hin + 2 * n_pad * hin * hout
    bytes_accessed = (n_pad * n_pad * 1 + n_pad * hin * 2 + hin * hout * 2
                      + hout * 4 + n_pad * 4 + n_pad * hout * 2)

    return pl.pallas_call(
        gcn_layer_kernel,
        out_shape=jax.ShapeDtypeStruct((n_pad, hout), jnp.bfloat16),
        grid=grid,
        in_specs=[
            pl.BlockSpec((tile, n_pad), lambda i: (i, 0)),   # streamed int8 (A~+I) row tile
            pl.BlockSpec((n_pad, hin), lambda i: (0, 0)),    # resident D^-1/2 H
            pl.BlockSpec((hin, hout), lambda i: (0, 0)),     # resident W
            pl.BlockSpec((1, hout), lambda i: (0, 0)),       # resident bias
            pl.BlockSpec((tile, 1), lambda i: (i, 0)),       # d^-1/2 row tile
        ],
        out_specs=pl.BlockSpec((tile, hout), lambda i: (i, 0)),
        compiler_params=_compiler_params(("parallel",), est_vmem),
        cost_estimate=pl.CostEstimate(flops=flops, transcendentals=0,
                                      bytes_accessed=bytes_accessed),
    )(a_i8, g_bf16, w_bf16, b_f32, dinv_col)


def _gcn_layer3_pool_linear_call(a_i8, g_bf16, w_bf16, b_f32, dinv_col,
                                 p_f32, wl_f32, bl_f32, tile):
    n_pad = a_i8.shape[0]
    hin = g_bf16.shape[1]
    hout = w_bf16.shape[1]
    b_pad = p_f32.shape[0]
    o_pad = wl_f32.shape[1]
    grid = (n_pad // tile,)

    est_vmem = (2 * tile * n_pad * 1
                + 2 * n_pad * hin * 2
                + 2 * (hin * hout * 2 + hout * 4 + tile * 4)
                + 2 * b_pad * tile * 4
                + 2 * (hout * o_pad * 4 + o_pad * 4)
                + 2 * b_pad * o_pad * 4
                + b_pad * hout * 4)
    flops = (2 * n_pad * n_pad * hin + 2 * n_pad * hin * hout
             + 2 * b_pad * n_pad * hout + 2 * b_pad * hout * o_pad)
    bytes_accessed = (n_pad * n_pad * 1 + n_pad * hin * 2 + hin * hout * 2
                      + hout * 4 + n_pad * 4 + b_pad * n_pad * 4
                      + hout * o_pad * 4 + o_pad * 4 + b_pad * o_pad * 4)

    return pl.pallas_call(
        gcn_layer3_pool_linear_kernel,
        out_shape=jax.ShapeDtypeStruct((b_pad, o_pad), jnp.float32),
        grid=grid,
        in_specs=[
            pl.BlockSpec((tile, n_pad), lambda i: (i, 0)),
            pl.BlockSpec((n_pad, hin), lambda i: (0, 0)),
            pl.BlockSpec((hin, hout), lambda i: (0, 0)),
            pl.BlockSpec((1, hout), lambda i: (0, 0)),
            pl.BlockSpec((tile, 1), lambda i: (i, 0)),
            pl.BlockSpec((b_pad, tile), lambda i: (0, i)),   # mean-pool matrix columns
            pl.BlockSpec((hout, o_pad), lambda i: (0, 0)),
            pl.BlockSpec((1, o_pad), lambda i: (0, 0)),
        ],
        out_specs=pl.BlockSpec((b_pad, o_pad), lambda i: (0, 0)),
        scratch_shapes=[pltpu.VMEM((b_pad, hout), jnp.float32)],
        compiler_params=_compiler_params(("arbitrary",), est_vmem),
        cost_estimate=pl.CostEstimate(flops=flops, transcendentals=0,
                                      bytes_accessed=bytes_accessed),
    )(a_i8, g_bf16, w_bf16, b_f32, dinv_col, p_f32, wl_f32, bl_f32)


# ---------------------------------------------------------------------------
# Forward pass
# ---------------------------------------------------------------------------
def gcn_regression_forward(x, edge_index, batch, params, num_graphs, *, row_tile=None):
    """JAX glue (jitted): build padded int8 (A~+I), d^-1/2 and P, call the kernels."""
    n, f = x.shape
    w1, b1, w2, b2, w3, b3, wl, bl = params
    hidden = w1.shape[1]
    num_out = wl.shape[1]

    n_pad = _round_up(n, LANE)
    f_pad = _round_up(f, LANE)
    h_pad = _round_up(hidden, LANE)
    o_pad = _round_up(num_out, LANE)
    b_pad = _round_up(num_graphs, 8)
    tile = _pick_row_tile(n_pad, max(f_pad, h_pad), row_tile)

    src, dst = edge_index[0], edge_index[1]
    idx = jnp.arange(n)
    # PyG gcn_norm: add_remaining_self_loops drops existing self loops, adds 1 per node
    off_w = (src != dst).astype(jnp.float32)

    # un-normalized (A~ + I), built straight into the padded buffer, streamed as int8
    adj = jnp.zeros((n_pad, n_pad), jnp.float32).at[dst, src].add(off_w)
    adj = adj.at[idx, idx].add(1.0)
    a_i8 = adj.astype(jnp.int8)

    # degree (over dst, flow='source_to_target') and d^-1/2 (zero on padded rows)
    deg = jnp.zeros((n_pad,), jnp.float32).at[dst].add(off_w).at[idx].add(1.0)
    dinv = jnp.where(deg > 0.0, lax.rsqrt(deg), 0.0)
    dinv_col = dinv[:, None]                                  # (n_pad, 1) f32

    # mean-pool matrix P[g, n] = 1/|g| * [batch[n] == g], built padded
    batch_pad = jnp.full((n_pad,), -1, jnp.int32).at[:n].set(batch.astype(jnp.int32))
    one_hot = (batch_pad[None, :] == jnp.arange(b_pad)[:, None]).astype(jnp.float32)
    counts = jnp.maximum(jnp.sum(one_hot, axis=1, keepdims=True), 1.0)
    p_f32 = one_hot / counts                                  # (b_pad, n_pad)

    # pre-scaled input features G0 = D^-1/2 X
    g0 = (_pad2d(x, n_pad, f_pad, jnp.float32) * dinv_col).astype(jnp.bfloat16)

    w1p = _pad2d(w1, f_pad, h_pad, jnp.bfloat16)
    w2p = _pad2d(w2, h_pad, h_pad, jnp.bfloat16)
    w3p = _pad2d(w3, h_pad, h_pad, jnp.bfloat16)
    b1p = _pad2d(b1, 1, h_pad, jnp.float32)
    b2p = _pad2d(b2, 1, h_pad, jnp.float32)
    b3p = _pad2d(b3, 1, h_pad, jnp.float32)
    wlp = _pad2d(wl, h_pad, o_pad, jnp.float32)
    blp = _pad2d(bl, 1, o_pad, jnp.float32)

    # GCNConv1/2 + ReLU (dropout = identity at inference); outputs already D^-1/2-scaled
    g1 = _gcn_layer_call(a_i8, g0, w1p, b1p, dinv_col, tile)
    g2 = _gcn_layer_call(a_i8, g1, w2p, b2p, dinv_col, tile)

    # GCNConv3 + ReLU + global_mean_pool + Linear, fused into one kernel
    out = _gcn_layer3_pool_linear_call(a_i8, g2, w3p, b3p, dinv_col, p_f32, wlp, blp, tile)

    out = out[:num_graphs, :num_out]
    if num_out == 1:
        out = out[:, 0]   # matches `out.squeeze(-1)` in the torch module
    return out


gcn_regression_forward_jit = jax.jit(
    gcn_regression_forward, static_argnames=("num_graphs", "row_tile"))


def init_params(key, num_node_features, hidden_channels, num_output_features=1):
    """Deterministic synthetic parameter init (shapes match the torch module)."""
    ks = jax.random.split(key, 8)

    def lin(k, fan_in, fan_out):
        scale = 1.0 / jnp.sqrt(fan_in)
        return jax.random.uniform(k, (fan_in, fan_out), jnp.float32, -scale, scale)

    w1 = lin(ks[0], num_node_features, hidden_channels)
    b1 = jax.random.uniform(ks[1], (1, hidden_channels), jnp.float32, -0.1, 0.1)
    w2 = lin(ks[2], hidden_channels, hidden_channels)
    b2 = jax.random.uniform(ks[3], (1, hidden_channels), jnp.float32, -0.1, 0.1)
    w3 = lin(ks[4], hidden_channels, hidden_channels)
    b3 = jax.random.uniform(ks[5], (1, hidden_channels), jnp.float32, -0.1, 0.1)
    wl = lin(ks[6], hidden_channels, num_output_features)
    bl = jax.random.uniform(ks[7], (1, num_output_features), jnp.float32, -0.1, 0.1)
    return (w1, b1, w2, b2, w3, b3, wl, bl)


if __name__ == "__main__":
    # Small synthetic graph batch: 2 graphs, 8 nodes each, 8 node features, hidden=32.
    num_node_features = 8
    hidden_channels = 32
    num_output_features = 1
    num_nodes = 16
    num_edges = 40
    num_graphs = 2

    key = jax.random.PRNGKey(0)
    k_x, k_e, k_p = jax.random.split(key, 3)

    x = jax.random.normal(k_x, (num_nodes, num_node_features), dtype=jnp.float32)

    # Random edges, kept within each graph's node range so the batch is well formed.
    ke1, ke2 = jax.random.split(k_e)
    src0 = jax.random.randint(ke1, (num_edges // 2,), 0, num_nodes // 2)
    dst0 = jax.random.randint(ke2, (num_edges // 2,), 0, num_nodes // 2)
    src1 = src0 + num_nodes // 2
    dst1 = dst0 + num_nodes // 2
    edge_index = jnp.stack([jnp.concatenate([src0, src1]),
                            jnp.concatenate([dst0, dst1])]).astype(jnp.int32)  # [2, E]

    batch = jnp.concatenate([jnp.zeros(num_nodes // 2, jnp.int32),
                             jnp.ones(num_nodes // 2, jnp.int32)])             # [N]

    params = init_params(k_p, num_node_features, hidden_channels, num_output_features)

    out = gcn_regression_forward_jit(x, edge_index, batch, params, num_graphs=num_graphs)
    jax.block_until_ready(out)
    assert out.shape == (num_graphs,)
    assert bool(jnp.all(jnp.isfinite(out)))
    print("KERNEL_OK")
</pallas_src>

<mosaic_0001>
module attributes {stable_mosaic.version = 11 : i64} {
  func.func private @main(%arg0: i32) attributes {dimension_semantics = [#tpu.dimension_semantics<core_parallel>], iteration_bounds = array<i64: 2>, tpu.core_type = #tpu.core_type<sc_scalar_subcore>, window_params = []} {
    return
  }
}

module attributes {stable_mosaic.version = 11 : i64} {
  func.func private @main(%arg0: i32) attributes {dimension_semantics = [#tpu.dimension_semantics<core_parallel>], iteration_bounds = array<i64: 2>, tpu.core_type = #tpu.core_type<sc_scalar_subcore>, window_params = []} {
    return
  }
}

module attributes {stable_mosaic.version = 11 : i64} {
  func.func @gcn_layer_kernel(%arg0: i32, %arg1: memref<128x128xi8, #tpu.memory_space<vmem>>, %arg2: memref<128x128xbf16, #tpu.memory_space<vmem>>, %arg3: memref<128x128xbf16, #tpu.memory_space<vmem>>, %arg4: memref<1x128xf32, #tpu.memory_space<vmem>>, %arg5: memref<128x1xf32, #tpu.memory_space<vmem>>, %arg6: memref<128x128xbf16, #tpu.memory_space<vmem>>) attributes {dimension_semantics = [#tpu.dimension_semantics<parallel>], iteration_bounds = array<i64: 1>, scalar_prefetch = 0 : i64, scratch_operands = 0 : i64, tpu.core_type = #tpu.core_type<tc>, window_params = [{transform_indices = @transform_0, window_bounds = array<i64: 128, 128>}, {pipeline_mode = #tpu.pipeline_mode<synchronous>, transform_indices = @transform_1, window_bounds = array<i64: 128, 128>}, {pipeline_mode = #tpu.pipeline_mode<synchronous>, transform_indices = @transform_2, window_bounds = array<i64: 128, 128>}, {pipeline_mode = #tpu.pipeline_mode<synchronous>, transform_indices = @transform_3, window_bounds = array<i64: 1, 128>}, {transform_indices = @transform_4, window_bounds = array<i64: 128, 1>}, {transform_indices = @transform_5, window_bounds = array<i64: 128, 128>}]} {
    %c0 = arith.constant 0 : index
    %c0_0 = arith.constant 0 : index
    %0 = vector.load %arg1[%c0, %c0_0] : memref<128x128xi8, #tpu.memory_space<vmem>>, vector<128x128xi8>
    %1 = arith.sitofp %0 : vector<128x128xi8> to vector<128x128xbf16>
    %c0_1 = arith.constant 0 : index
    %c0_2 = arith.constant 0 : index
    %2 = vector.load %arg2[%c0_1, %c0_2] : memref<128x128xbf16, #tpu.memory_space<vmem>>, vector<128x128xbf16>
    %cst = arith.constant dense<0.000000e+00> : vector<128x128xf32>
    %3 = tpu.matmul %1, %2, %cst {dimension_numbers = #tpu.dot_dimension_numbers<[1], [0], [0], [1], [0, 0, 1, 1], [], []>} : vector<128x128xbf16>, vector<128x128xbf16>, vector<128x128xf32> -> vector<128x128xf32>
    %c0_3 = arith.constant 0 : index
    %c0_4 = arith.constant 0 : index
    %4 = vector.load %arg5[%c0_3, %c0_4] : memref<128x1xf32, #tpu.memory_space<vmem>>, vector<128x1xf32>
    %5 = arith.truncf %3 : vector<128x128xf32> to vector<128x128xbf16>
    %c0_5 = arith.constant 0 : index
    %c0_6 = arith.constant 0 : index
    %6 = vector.load %arg3[%c0_5, %c0_6] : memref<128x128xbf16, #tpu.memory_space<vmem>>, vector<128x128xbf16>
    %cst_7 = arith.constant dense<0.000000e+00> : vector<128x128xf32>
    %7 = tpu.matmul %5, %6, %cst_7 {dimension_numbers = #tpu.dot_dimension_numbers<[1], [0], [0], [1], [0, 0, 1, 1], [], []>} : vector<128x128xbf16>, vector<128x128xbf16>, vector<128x128xf32> -> vector<128x128xf32>
    %8 = vector.broadcast %4 : vector<128x1xf32> to vector<128x128xf32>
    %9 = arith.mulf %8, %7 : vector<128x128xf32>
    %c0_8 = arith.constant 0 : index
    %c0_9 = arith.constant 0 : index
    %10 = vector.load %arg4[%c0_8, %c0_9] : memref<1x128xf32, #tpu.memory_space<vmem>>, vector<1x128xf32>
    %11 = vector.broadcast %10 : vector<1x128xf32> to vector<128x128xf32>
    %12 = arith.addf %9, %11 : vector<128x128xf32>
    %cst_10 = arith.constant 0.000000e+00 : f32
    %13 = vector.broadcast %cst_10 : f32 to vector<128x128xf32>
    %14 = arith.maximumf %12, %13 : vector<128x128xf32>
    %c0_11 = arith.constant 0 : index
    %c0_12 = arith.constant 0 : index
    %15 = vector.load %arg5[%c0_11, %c0_12] : memref<128x1xf32, #tpu.memory_space<vmem>>, vector<128x1xf32>
    %16 = vector.broadcast %15 : vector<128x1xf32> to vector<128x128xf32>
    %17 = arith.mulf %14, %16 : vector<128x128xf32>
    %18 = arith.truncf %17 : vector<128x128xf32> to vector<128x128xbf16>
    %c0_13 = arith.constant 0 : index
    %c0_14 = arith.constant 0 : index
    %19 = vector.load %arg6[%c0_13, %c0_14] : memref<128x128xbf16, #tpu.memory_space<vmem>>, vector<128x128xbf16>
    tpu.vector_store %arg6[%c0_13, %c0_14], %18 {strides = array<i32>} : memref<128x128xbf16, #tpu.memory_space<vmem>>, vector<128x128xbf16>,
    return
  }
  func.func @transform_0(%arg0: i32) -> (i32, i32) {
    %c0_i32 = arith.constant 0 : i32
    %c0_i32_0 = arith.constant 0 : i32
    return %arg0, %c0_i32 : i32, i32
  }
  func.func @transform_1(%arg0: i32) -> (i32, i32) {
    %c0_i32 = arith.constant 0 : i32
    %c0_i32_0 = arith.constant 0 : i32
    %c0_i32_1 = arith.constant 0 : i32
    return %c0_i32, %c0_i32_0 : i32, i32
  }
  func.func @transform_2(%arg0: i32) -> (i32, i32) {
    %c0_i32 = arith.constant 0 : i32
    %c0_i32_0 = arith.constant 0 : i32
    %c0_i32_1 = arith.constant 0 : i32
    return %c0_i32, %c0_i32_0 : i32, i32
  }
  func.func @transform_3(%arg0: i32) -> (i32, i32) {
    %c0_i32 = arith.constant 0 : i32
    %c0_i32_0 = arith.constant 0 : i32
    %c0_i32_1 = arith.constant 0 : i32
    return %c0_i32, %c0_i32_0 : i32, i32
  }
  func.func @transform_4(%arg0: i32) -> (i32, i32) {
    %c0_i32 = arith.constant 0 : i32
    %c0_i32_0 = arith.constant 0 : i32
    return %arg0, %c0_i32 : i32, i32
  }
  func.func @transform_5(%arg0: i32) -> (i32, i32) {
    %c0_i32 = arith.constant 0 : i32
    %c0_i32_0 = arith.constant 0 : i32
    return %arg0, %c0_i32 : i32, i32
  }
}

module attributes {stable_mosaic.version = 11 : i64} {
  func.func @gcn_layer3_pool_linear_kernel(%arg0: i32, %arg1: memref<128x128xi8, #tpu.memory_space<vmem>>, %arg2: memref<128x128xbf16, #tpu.memory_space<vmem>>, %arg3: memref<128x128xbf16, #tpu.memory_space<vmem>>, %arg4: memref<1x128xf32, #tpu.memory_space<vmem>>, %arg5: memref<128x1xf32, #tpu.memory_space<vmem>>, %arg6: memref<8x128xf32, #tpu.memory_space<vmem>>, %arg7: memref<128x128xf32, #tpu.memory_space<vmem>>, %arg8: memref<1x128xf32, #tpu.memory_space<vmem>>, %arg9: memref<8x128xf32, #tpu.memory_space<vmem>>, %arg10: memref<8x128xf32, #tpu.memory_space<vmem>>) attributes {dimension_semantics = [#tpu.dimension_semantics<arbitrary>], iteration_bounds = array<i64: 1>, scalar_prefetch = 0 : i64, scratch_operands = 1 : i64, tpu.core_type = #tpu.core_type<tc>, window_params = [{transform_indices = @transform_0, window_bounds = array<i64: 128, 128>}, {pipeline_mode = #tpu.pipeline_mode<synchronous>, transform_indices = @transform_1, window_bounds = array<i64: 128, 128>}, {pipeline_mode = #tpu.pipeline_mode<synchronous>, transform_indices = @transform_2, window_bounds = array<i64: 128, 128>}, {pipeline_mode = #tpu.pipeline_mode<synchronous>, transform_indices = @transform_3, window_bounds = array<i64: 1, 128>}, {transform_indices = @transform_4, window_bounds = array<i64: 128, 1>}, {transform_indices = @transform_5, window_bounds = array<i64: 8, 128>}, {pipeline_mode = #tpu.pipeline_mode<synchronous>, transform_indices = @transform_6, window_bounds = array<i64: 128, 128>}, {pipeline_mode = #tpu.pipeline_mode<synchronous>, transform_indices = @transform_7, window_bounds = array<i64: 1, 128>}, {pipeline_mode = #tpu.pipeline_mode<synchronous>, transform_indices = @transform_8, window_bounds = array<i64: 8, 128>}]} {
    %c0_i32 = arith.constant 0 : i32
    %0 = arith.cmpi eq, %arg0, %c0_i32 : i32
    %1 = arith.extui %0 : i1 to i32
    %c0_i32_0 = arith.constant 0 : i32
    %2 = arith.cmpi ne, %1, %c0_i32_0 : i32
    scf.if %2 {
      %cst_21 = arith.constant 0.000000e+00 : f32
      %26 = vector.broadcast %cst_21 : f32 to vector<8x128xf32>
      %c0_22 = arith.constant 0 : index
      %c0_23 = arith.constant 0 : index
      %27 = vector.load %arg10[%c0_22, %c0_23] : memref<8x128xf32, #tpu.memory_space<vmem>>, vector<8x128xf32>
      tpu.vector_store %arg10[%c0_22, %c0_23], %26 {strides = array<i32>} : memref<8x128xf32, #tpu.memory_space<vmem>>, vector<8x128xf32>,
    } else {
    }
    %c0 = arith.constant 0 : index
    %c0_1 = arith.constant 0 : index
    %3 = vector.load %arg1[%c0, %c0_1] : memref<128x128xi8, #tpu.memory_space<vmem>>, vector<128x128xi8>
    %4 = arith.sitofp %3 : vector<128x128xi8> to vector<128x128xbf16>
    %c0_2 = arith.constant 0 : index
    %c0_3 = arith.constant 0 : index
    %5 = vector.load %arg2[%c0_2, %c0_3] : memref<128x128xbf16, #tpu.memory_space<vmem>>, vector<128x128xbf16>
    %cst = arith.constant dense<0.000000e+00> : vector<128x128xf32>
    %6 = tpu.matmul %4, %5, %cst {dimension_numbers = #tpu.dot_dimension_numbers<[1], [0], [0], [1], [0, 0, 1, 1], [], []>} : vector<128x128xbf16>, vector<128x128xbf16>, vector<128x128xf32> -> vector<128x128xf32>
    %c0_4 = arith.constant 0 : index
    %c0_5 = arith.constant 0 : index
    %7 = vector.load %arg5[%c0_4, %c0_5] : memref<128x1xf32, #tpu.memory_space<vmem>>, vector<128x1xf32>
    %8 = arith.truncf %6 : vector<128x128xf32> to vector<128x128xbf16>
    %c0_6 = arith.constant 0 : index
    %c0_7 = arith.constant 0 : index
    %9 = vector.load %arg3[%c0_6, %c0_7] : memref<128x128xbf16, #tpu.memory_space<vmem>>, vector<128x128xbf16>
    %cst_8 = arith.constant dense<0.000000e+00> : vector<128x128xf32>
    %10 = tpu.matmul %8, %9, %cst_8 {dimension_numbers = #tpu.dot_dimension_numbers<[1], [0], [0], [1], [0, 0, 1, 1], [], []>} : vector<128x128xbf16>, vector<128x128xbf16>, vector<128x128xf32> -> vector<128x128xf32>
    %11 = vector.broadcast %7 : vector<128x1xf32> to vector<128x128xf32>
    %12 = arith.mulf %11, %10 : vector<128x128xf32>
    %c0_9 = arith.constant 0 : index
    %c0_10 = arith.constant 0 : index
    %13 = vector.load %arg4[%c0_9, %c0_10] : memref<1x128xf32, #tpu.memory_space<vmem>>, vector<1x128xf32>
    %14 = vector.broadcast %13 : vector<1x128xf32> to vector<128x128xf32>
    %15 = arith.addf %12, %14 : vector<128x128xf32>
    %cst_11 = arith.constant 0.000000e+00 : f32
    %16 = vector.broadcast %cst_11 : f32 to vector<128x128xf32>
    %17 = arith.maximumf %15, %16 : vector<128x128xf32>
    %c0_12 = arith.constant 0 : index
    %c0_13 = arith.constant 0 : index
    %18 = vector.load %arg10[%c0_12, %c0_13] : memref<8x128xf32, #tpu.memory_space<vmem>>, vector<8x128xf32>
    %c0_14 = arith.constant 0 : index
    %c0_15 = arith.constant 0 : index
    %19 = vector.load %arg6[%c0_14, %c0_15] : memref<8x128xf32, #tpu.memory_space<vmem>>, vector<8x128xf32>
    %cst_16 = arith.constant dense<0.000000e+00> : vector<8x128xf32>
    %20 = tpu.matmul %19, %17, %cst_16 {dimension_numbers = #tpu.dot_dimension_numbers<[1], [0], [0], [1], [0, 0, 1, 1], [], []>} : vector<8x128xf32>, vector<128x128xf32>, vector<8x128xf32> -> vector<8x128xf32>
    %21 = arith.addf %18, %20 : vector<8x128xf32>
    %c0_17 = arith.constant 0 : index
    %c0_18 = arith.constant 0 : index
    %22 = vector.load %arg10[%c0_17, %c0_18] : memref<8x128xf32, #tpu.memory_space<vmem>>, vector<8x128xf32>
    tpu.vector_store %arg10[%c0_17, %c0_18], %21 {strides = array<i32>} : memref<8x128xf32, #tpu.memory_space<vmem>>, vector<8x128xf32>,
    %c0_i32_19 = arith.constant 0 : i32
    %23 = arith.cmpi eq, %arg0, %c0_i32_19 : i32
    %24 = arith.extui %23 : i1 to i32
    %c0_i32_20 = arith.constant 0 : i32
    %25 = arith.cmpi ne, %24, %c0_i32_20 : i32
    scf.if %25 {
      %c0_21 = arith.constant 0 : index
      %c0_22 = arith.constant 0 : index
      %26 = vector.load %arg10[%c0_21, %c0_22] : memref<8x128xf32, #tpu.memory_space<vmem>>, vector<8x128xf32>
      %c0_23 = arith.constant 0 : index
      %c0_24 = arith.constant 0 : index
      %27 = vector.load %arg7[%c0_23, %c0_24] : memref<128x128xf32, #tpu.memory_space<vmem>>, vector<128x128xf32>
      %cst_25 = arith.constant dense<0.000000e+00> : vector<8x128xf32>
      %28 = tpu.matmul %26, %27, %cst_25 {dimension_numbers = #tpu.dot_dimension_numbers<[1], [0], [0], [1], [0, 0, 1, 1], [], []>} : vector<8x128xf32>, vector<128x128xf32>, vector<8x128xf32> -> vector<8x128xf32>
      %c0_26 = arith.constant 0 : index
      %c0_27 = arith.constant 0 : index
      %29 = vector.load %arg8[%c0_26, %c0_27] : memref<1x128xf32, #tpu.memory_space<vmem>>, vector<1x128xf32>
      %30 = vector.broadcast %29 : vector<1x128xf32> to vector<8x128xf32>
      %31 = arith.addf %28, %30 : vector<8x128xf32>
      %c0_28 = arith.constant 0 : index
      %c0_29 = arith.constant 0 : index
      %32 = vector.load %arg9[%c0_28, %c0_29] : memref<8x128xf32, #tpu.memory_space<vmem>>, vector<8x128xf32>
      tpu.vector_store %arg9[%c0_28, %c0_29], %31 {strides = array<i32>} : memref<8x128xf32, #tpu.memory_space<vmem>>, vector<8x128xf32>,
    } else {
    }
    return
  }
  func.func @transform_0(%arg0: i32) -> (i32, i32) {
    %c0_i32 = arith.constant 0 : i32
    %c0_i32_0 = arith.constant 0 : i32
    return %arg0, %c0_i32 : i32, i32
  }
  func.func @transform_1(%arg0: i32) -> (i32, i32) {
    %c0_i32 = arith.constant 0 : i32
    %c0_i32_0 = arith.constant 0 : i32
    %c0_i32_1 = arith.constant 0 : i32
    return %c0_i32, %c0_i32_0 : i32, i32
  }
  func.func @transform_2(%arg0: i32) -> (i32, i32) {
    %c0_i32 = arith.constant 0 : i32
    %c0_i32_0 = arith.constant 0 : i32
    %c0_i32_1 = arith.constant 0 : i32
    return %c0_i32, %c0_i32_0 : i32, i32
  }
  func.func @transform_3(%arg0: i32) -> (i32, i32) {
    %c0_i32 = arith.constant 0 : i32
    %c0_i32_0 = arith.constant 0 : i32
    %c0_i32_1 = arith.constant 0 : i32
    return %c0_i32, %c0_i32_0 : i32, i32
  }
  func.func @transform_4(%arg0: i32) -> (i32, i32) {
    %c0_i32 = arith.constant 0 : i32
    %c0_i32_0 = arith.constant 0 : i32
    return %arg0, %c0_i32 : i32, i32
  }
  func.func @transform_5(%arg0: i32) -> (i32, i32) {
    %c0_i32 = arith.constant 0 : i32
    %c0_i32_0 = arith.constant 0 : i32
    return %c0_i32, %arg0 : i32, i32
  }
  func.func @transform_6(%arg0: i32) -> (i32, i32) {
    %c0_i32 = arith.constant 0 : i32
    %c0_i32_0 = arith.constant 0 : i32
    %c0_i32_1 = arith.constant 0 : i32
    return %c0_i32, %c0_i32_0 : i32, i32
  }
  func.func @transform_7(%arg0: i32) -> (i32, i32) {
    %c0_i32 = arith.constant 0 : i32
    %c0_i32_0 = arith.constant 0 : i32
    %c0_i32_1 = arith.constant 0 : i32
    return %c0_i32, %c0_i32_0 : i32, i32
  }
  func.func @transform_8(%arg0: i32) -> (i32, i32) {
    %c0_i32 = arith.constant 0 : i32
    %c0_i32_0 = arith.constant 0 : i32
    %c0_i32_1 = arith.constant 0 : i32
    return %c0_i32, %c0_i32_0 : i32, i32
  }
}

</mosaic_0001>

<llo_original>
// kernel: gcn_regression_forward.3
$region0: #{gcn_regression_forward.3}
  #allocation0 [shape = 'u32[]', space=smem, size = 0x4, offset = 0x4, fixed_abs, tag = 'smem constant byte address 0x4 - core index']
  #allocation1 [shape = 'u32[144,128]{1,0:T(1,128)}', space=vmem, size = 0x12000, scoped, tag = 'internal scratch']
  %s0 = inlined_call_operand.vmem [shape: s8[128,128], index: 0, kind: input, shape index: {}]
  %s1 = inlined_call_operand.vmem [shape: bf16[128,128], index: 1, kind: input, shape index: {}]
  %s2 = inlined_call_operand.vmem [shape: bf16[128,128], index: 2, kind: input, shape index: {}]
  %s3 = inlined_call_operand.vmem [shape: f32[1,128], index: 3, kind: input, shape index: {}]
  %s4 = inlined_call_operand.vmem [shape: f32[128,1], index: 4, kind: input, shape index: {}]
  %s5 = inlined_call_operand.vmem [shape: bf16[128,128], index: 5, kind: output, shape index: {}]
  %s6 = sld [smem:[#allocation0]]
  $region30: #{gcn_regression_forward.3} parent=0
    _
  %s8 = ssub.s32 1, %s6
  %s9 = scalar_select 0, %s8, %s6
  // Predicated region
  $region2: #{gcn_regression_forward.3} parent=0 // pred_check
    _
  $region3: #{gcn_regression_forward.3} parent=0 // pred_check_branch
    %11 = sbr.rel (0) target = $region5
  $region4: #{gcn_regression_forward.3} parent=0 // pred_region
    _
  $region5: #{gcn_regression_forward.3} parent=0 // pred_fallthru
    _
  // Predicated region
  $region6: #{gcn_regression_forward.3} parent=0 // pred_check
    _
  $region7: #{gcn_regression_forward.3} parent=0 // pred_check_branch
    %13 = sbr.rel (0) target = $region9
  $region8: #{gcn_regression_forward.3} parent=0 // pred_region
    _
  $region9: #{gcn_regression_forward.3} parent=0 // pred_fallthru
    _
  // Predicated region
  $region10: #{gcn_regression_forward.3} parent=0 // pred_check
    _
  $region11: #{gcn_regression_forward.3} parent=0 // pred_check_branch
    %15 = sbr.rel (0) target = $region13
  $region12: #{gcn_regression_forward.3} parent=0 // pred_region
    _
  $region13: #{gcn_regression_forward.3} parent=0 // pred_fallthru
    _
  // Predicated region
  $region14: #{gcn_regression_forward.3} parent=0 // pred_check
    _
  $region15: #{gcn_regression_forward.3} parent=0 // pred_check_branch
    %17 = sbr.rel (0) target = $region17
  $region16: #{gcn_regression_forward.3} parent=0 // pred_region
    _
  $region17: #{gcn_regression_forward.3} parent=0 // pred_fallthru
    _
  // Predicated region
  $region18: #{gcn_regression_forward.3} parent=0 // pred_check
    _
  $region19: #{gcn_regression_forward.3} parent=0 // pred_check_branch
    %19 = sbr.rel (0) target = $region21
  $region20: #{gcn_regression_forward.3} parent=0 // pred_region
    _
  $region21: #{gcn_regression_forward.3} parent=0 // pred_fallthru
    _
  %v21 = vld [vmem:[%s0] sm:$0xff]
  %v22 = vld [vmem:[%s0 + $0x8] sm:$0xff]
  %v23 = vld [vmem:[%s0 + $0x10] sm:$0xff]
  %v24 = vld [vmem:[%s0 + $0x18] sm:$0xff]
  %v25 = vunpack.c.l.s8.bf16 %v21
  %v26 = vunpack.c.h.s8.bf16 %v21
  %v27 = vunpack.c.l.s8.bf16 %v22
  %v28 = vunpack.c.h.s8.bf16 %v22
  %v29 = vunpack.c.l.s8.bf16 %v23
  %v30 = vunpack.c.h.s8.bf16 %v23
  %v31 = vunpack.c.l.s8.bf16 %v24
  %v32 = vunpack.c.h.s8.bf16 %v24
  %v33 = vld [vmem:[%s1] sm:$0xf]
  %v34 = vld [vmem:[%s1 + $0x4] sm:$0xf]
  %v35 = vld [vmem:[%s1 + $0x8] sm:$0xf]
  %v36 = vld [vmem:[%s1 + $0xc] sm:$0xf]
  %v37 = vld [vmem:[%s1 + $0x10] sm:$0xf]
  %v38 = vld [vmem:[%s1 + $0x14] sm:$0xf]
  %v39 = vld [vmem:[%s1 + $0x18] sm:$0xf]
  %v40 = vld [vmem:[%s1 + $0x1c] sm:$0xf]
  %v41 = vld [vmem:[%s1 + $0x20] sm:$0xf]
  %v42 = vld [vmem:[%s1 + $0x24] sm:$0xf]
  %v43 = vld [vmem:[%s1 + $0x28] sm:$0xf]
  %v44 = vld [vmem:[%s1 + $0x2c] sm:$0xf]
  %v45 = vld [vmem:[%s1 + $0x30] sm:$0xf]
  %v46 = vld [vmem:[%s1 + $0x34] sm:$0xf]
  %v47 = vld [vmem:[%s1 + $0x38] sm:$0xf]
  %v48 = vld [vmem:[%s1 + $0x3c] sm:$0xf]
  %v65 = vunpack.c.l.b16 %v33
  %v66 = vunpack.c.l.b16 %v34
  %v67 = vunpack.c.l.b16 %v35
  %v68 = vunpack.c.l.b16 %v36
  %v69 = vunpack.c.l.b16 %v37
  %v70 = vunpack.c.l.b16 %v38
  %v71 = vunpack.c.l.b16 %v39
  %v72 = vunpack.c.l.b16 %v40
  %v73 = vunpack.c.l.b16 %v41
  %v74 = vunpack.c.l.b16 %v42
  %v75 = vunpack.c.l.b16 %v43
  %v76 = vunpack.c.l.b16 %v44
  %v77 = vunpack.c.l.b16 %v45
  %v78 = vunpack.c.l.b16 %v46
  %v79 = vunpack.c.l.b16 %v47
  %v80 = vunpack.c.l.b16 %v48
  %v81 = vpack.c.b16 %v66, %v65
  %v82 = vpack.c.b16 %v68, %v67
  %v83 = vpack.c.b16 %v70, %v69
  %v84 = vpack.c.b16 %v72, %v71
  %v85 = vpack.c.b16 %v74, %v73
  %v86 = vpack.c.b16 %v76, %v75
  %v87 = vpack.c.b16 %v78, %v77
  %v88 = vpack.c.b16 %v80, %v79
  %97 = vmatprep.subr.bf16.mxu0 0
  %98 = vmatpush1.bf16.msra.mxu0 %v81
  %99 = vmatprep.subr.bf16.mxu0 0
  %100 = vmatpush1.bf16.msra.mxu0 %v82
  %101 = vmatprep.subr.bf16.mxu0 0
  %102 = vmatpush1.bf16.msra.mxu0 %v83
  %103 = vmatprep.subr.bf16.mxu0 0
  %104 = vmatpush1.bf16.msra.mxu0 %v84
  %105 = vmatprep.subr.bf16.mxu0 0
  %106 = vmatpush1.bf16.msra.mxu0 %v85
  %107 = vmatprep.subr.bf16.mxu0 0
  %108 = vmatpush1.bf16.msra.mxu0 %v86
  %109 = vmatprep.subr.bf16.mxu0 0
  %110 = vmatpush1.bf16.msra.mxu0 %v87
  %111 = vmatprep.subr.bf16.mxu0 0
  %112 = vmatpush1.bf16.msra.mxu0 %v88
  %113 = vmatprep.subr.bf16.mxu0 0
  %114 = vmatpush1.bf16.msra.mxu0 0
  %115 = vmatprep.subr.bf16.mxu0 0
  %116 = vmatpush1.bf16.msra.mxu0 0
  %117 = vmatprep.subr.bf16.mxu0 0
  %118 = vmatpush1.bf16.msra.mxu0 0
  %119 = vmatprep.subr.bf16.mxu0 0
  %120 = vmatpush1.bf16.msra.mxu0 0
  %121 = vmatprep.subr.bf16.mxu0 0
  %122 = vmatpush1.bf16.msra.mxu0 0
  %123 = vmatprep.subr.bf16.mxu0 0
  %124 = vmatpush1.bf16.msra.mxu0 0
  %125 = vmatprep.subr.bf16.mxu0 0
  %126 = vmatpush1.bf16.msra.mxu0 0
  %127 = vmatprep.subr.bf16.mxu0 0
  %128 = vmatpush1.bf16.msra.mxu0 0
  %129 = vmatprep.mubr.bf16.mxu0 0
  %130 = vmatmul.mubr.bf16.gmra.mrb[0].mxu0 %v25
  %v131 = vpop.f32.mrb[0].mxu0
  %v132 = vadd.f32 0.0, %v131
  %v133 = vpop.f32.mrb[0].mxu0
  %v134 = vpop.f32.mrb[0].mxu0
  %v135 = vadd.f32 0.0, %v134
  %v136 = vpop.f32.mrb[0].mxu0
  %137 = vmatprep.mubr.bf16.mxu0 0
  %138 = vmatmul.mubr.bf16.gmra.mrb[0].mxu0 %v26
  %v139 = vpop.f32.mrb[0].mxu0
  %v140 = vadd.f32 0.0, %v139
  %v141 = vpop.f32.mrb[0].mxu0
  %v142 = vpop.f32.mrb[0].mxu0
  %v143 = vadd.f32 0.0, %v142
  %v144 = vpop.f32.mrb[0].mxu0
  %145 = vmatprep.mubr.bf16.mxu0 0
  %146 = vmatmul.mubr.bf16.gmra.mrb[0].mxu0 %v27
  %v147 = vpop.f32.mrb[0].mxu0
  %v148 = vadd.f32 0.0, %v147
  %v149 = vpop.f32.mrb[0].mxu0
  %v150 = vpop.f32.mrb[0].mxu0
  %v151 = vadd.f32 0.0, %v150
  %v152 = vpop.f32.mrb[0].mxu0
  %153 = vmatprep.mubr.bf16.mxu0 0
  %154 = vmatmul.mubr.bf16.gmra.mrb[0].mxu0 %v28
  %v155 = vpop.f32.mrb[0].mxu0
  %v156 = vadd.f32 0.0, %v155
  %v157 = vpop.f32.mrb[0].mxu0
  %v158 = vpop.f32.mrb[0].mxu0
  %v159 = vadd.f32 0.0, %v158
  %v160 = vpop.f32.mrb[0].mxu0
  %161 = vmatprep.mubr.bf16.mxu0 0
  %162 = vmatmul.mubr.bf16.gmra.mrb[0].mxu0 %v29
  %v163 = vpop.f32.mrb[0].mxu0
  %v164 = vadd.f32 0.0, %v163
  %v165 = vpop.f32.mrb[0].mxu0
  %v166 = vpop.f32.mrb[0].mxu0
  %v167 = vadd.f32 0.0, %v166
  %v168 = vpop.f32.mrb[0].mxu0
  %169 = vmatprep.mubr.bf16.mxu0 0
  %170 = vmatmul.mubr.bf16.gmra.mrb[0].mxu0 %v30
  %v171 = vpop.f32.mrb[0].mxu0
  %v172 = vadd.f32 0.0, %v171
  %v173 = vpop.f32.mrb[0].mxu0
  %v174 = vpop.f32.mrb[0].mxu0
  %v175 = vadd.f32 0.0, %v174
  %v176 = vpop.f32.mrb[0].mxu0
  %177 = vmatprep.mubr.bf16.mxu0 0
  %178 = vmatmul.mubr.bf16.gmra.mrb[0].mxu0 %v31
  %v179 = vpop.f32.mrb[0].mxu0
  %v180 = vadd.f32 0.0, %v179
  %v181 = vpop.f32.mrb[0].mxu0
  %v182 = vpop.f32.mrb[0].mxu0
  %v183 = vadd.f32 0.0, %v182
  %v184 = vpop.f32.mrb[0].mxu0
  %185 = vmatprep.mubr.bf16.mxu0 0
  %186 = vmatmul.mubr.bf16.gmra.mrb[0].mxu0 %v32
  %v187 = vpop.f32.mrb[0].mxu0
  %v188 = vadd.f32 0.0, %v187
  %v189 = vpop.f32.mrb[0].mxu0
  %v190 = vpop.f32.mrb[0].mxu0
  %v191 = vadd.f32 0.0, %v190
  %v192 = vpop.f32.mrb[0].mxu0
  %193 = vdwg.mxu0
  %v194 = vld [vmem:[%s4] sm:$0xff]
  %v195 = vld [vmem:[%s4 + $0x8] sm:$0xff]
  %v196 = vld [vmem:[%s4 + $0x10] sm:$0xff]
  %v197 = vld [vmem:[%s4 + $0x18] sm:$0xff]
  %v198 = vld [vmem:[%s4 + $0x20] sm:$0xff]
  %v199 = vld [vmem:[%s4 + $0x28] sm:$0xff]
  %v200 = vld [vmem:[%s4 + $0x30] sm:$0xff]
  %v201 = vld [vmem:[%s4 + $0x38] sm:$0xff]
  %v202 = vld [vmem:[%s4 + $0x40] sm:$0xff]
  %v203 = vld [vmem:[%s4 + $0x48] sm:$0xff]
  %v204 = vld [vmem:[%s4 + $0x50] sm:$0xff]
  %v205 = vld [vmem:[%s4 + $0x58] sm:$0xff]
  %v206 = vld [vmem:[%s4 + $0x60] sm:$0xff]
  %v207 = vld [vmem:[%s4 + $0x68] sm:$0xff]
  %v208 = vld [vmem:[%s4 + $0x70] sm:$0xff]
  %v209 = vld [vmem:[%s4 + $0x78] sm:$0xff]
  %v210 = vpack.c.bf16 %v135, %v132
  %v211 = vpack.c.bf16 %v143, %v140
  %v212 = vpack.c.bf16 %v151, %v148
  %v213 = vpack.c.bf16 %v159, %v156
  %v214 = vpack.c.bf16 %v167, %v164
  %v215 = vpack.c.bf16 %v175, %v172
  %v216 = vpack.c.bf16 %v183, %v180
  %v217 = vpack.c.bf16 %v191, %v188
  %v218 = vld [vmem:[%s2] sm:$0xf]
  %v219 = vld [vmem:[%s2 + $0x4] sm:$0xf]
  %v220 = vld [vmem:[%s2 + $0x8] sm:$0xf]
  %v221 = vld [vmem:[%s2 + $0xc] sm:$0xf]
  %v222 = vld [vmem:[%s2 + $0x10] sm:$0xf]
  %v223 = vld [vmem:[%s2 + $0x14] sm:$0xf]
  %v224 = vld [vmem:[%s2 + $0x18] sm:$0xf]
  %v225 = vld [vmem:[%s2 + $0x1c] sm:$0xf]
  %v226 = vld [vmem:[%s2 + $0x20] sm:$0xf]
  %v227 = vld [vmem:[%s2 + $0x24] sm:$0xf]
  %v228 = vld [vmem:[%s2 + $0x28] sm:$0xf]
  %v229 = vld [vmem:[%s2 + $0x2c] sm:$0xf]
  %v230 = vld [vmem:[%s2 + $0x30] sm:$0xf]
  %v231 = vld [vmem:[%s2 + $0x34] sm:$0xf]
  %v232 = vld [vmem:[%s2 + $0x38] sm:$0xf]
  %v233 = vld [vmem:[%s2 + $0x3c] sm:$0xf]
  %v250 = vunpack.c.l.b16 %v218
  %v251 = vunpack.c.l.b16 %v219
  %v252 = vunpack.c.l.b16 %v220
  %v253 = vunpack.c.l.b16 %v221
  %v254 = vunpack.c.l.b16 %v222
  %v255 = vunpack.c.l.b16 %v223
  %v256 = vunpack.c.l.b16 %v224
  %v257 = vunpack.c.l.b16 %v225
  %v258 = vunpack.c.l.b16 %v226
  %v259 = vunpack.c.l.b16 %v227
  %v260 = vunpack.c.l.b16 %v228
  %v261 = vunpack.c.l.b16 %v229
  %v262 = vunpack.c.l.b16 %v230
  %v263 = vunpack.c.l.b16 %v231
  %v264 = vunpack.c.l.b16 %v232
  %v265 = vunpack.c.l.b16 %v233
  %v266 = vpack.c.b16 %v251, %v250
  %v267 = vpack.c.b16 %v253, %v252
  %v268 = vpack.c.b16 %v255, %v254
  %v269 = vpack.c.b16 %v257, %v256
  %v270 = vpack.c.b16 %v259, %v258
  %v271 = vpack.c.b16 %v261, %v260
  %v272 = vpack.c.b16 %v263, %v262
  %v273 = vpack.c.b16 %v265, %v264
  %282 = vmatprep.subr.bf16.mxu0 0
  %283 = vmatpush1.bf16.msra.mxu0 %v266
  %284 = vmatprep.subr.bf16.mxu0 0
  %285 = vmatpush1.bf16.msra.mxu0 %v267
  %286 = vmatprep.subr.bf16.mxu0 0
  %287 = vmatpush1.bf16.msra.mxu0 %v268
  %288 = vmatprep.subr.bf16.mxu0 0
  %289 = vmatpush1.bf16.msra.mxu0 %v269
  %290 = vmatprep.subr.bf16.mxu0 0
  %291 = vmatpush1.bf16.msra.mxu0 %v270
  %292 = vmatprep.subr.bf16.mxu0 0
  %293 = vmatpush1.bf16.msra.mxu0 %v271
  %294 = vmatprep.subr.bf16.mxu0 0
  %295 = vmatpush1.bf16.msra.mxu0 %v272
  %296 = vmatprep.subr.bf16.mxu0 0
  %297 = vmatpush1.bf16.msra.mxu0 %v273
  %298 = vmatprep.subr.bf16.mxu0 0
  %299 = vmatpush1.bf16.msra.mxu0 0
  %300 = vmatprep.subr.bf16.mxu0 0
  %301 = vmatpush1.bf16.msra.mxu0 0
  %302 = vmatprep.subr.bf16.mxu0 0
  %303 = vmatpush1.bf16.msra.mxu0 0
  %304 = vmatprep.subr.bf16.mxu0 0
  %305 = vmatpush1.bf16.msra.mxu0 0
  %306 = vmatprep.subr.bf16.mxu0 0
  %307 = vmatpush1.bf16.msra.mxu0 0
  %308 = vmatprep.subr.bf16.mxu0 0
  %309 = vmatpush1.bf16.msra.mxu0 0
  %310 = vmatprep.subr.bf16.mxu0 0
  %311 = vmatpush1.bf16.msra.mxu0 0
  %312 = vmatprep.subr.bf16.mxu0 0
  %313 = vmatpush1.bf16.msra.mxu0 0
  %314 = vmatprep.mubr.bf16.mxu0 0
  %315 = vmatmul.mubr.bf16.gmra.mrb[0].mxu0 %v210
  %v316 = vpop.f32.mrb[0].mxu0
  %v317 = vadd.f32 0.0, %v316
  %v318 = vpop.f32.mrb[0].mxu0
  %v319 = vpop.f32.mrb[0].mxu0
  %v320 = vadd.f32 0.0, %v319
  %v321 = vpop.f32.mrb[0].mxu0
  %322 = vmatprep.mubr.bf16.mxu0 0
  %323 = vmatmul.mubr.bf16.gmra.mrb[0].mxu0 %v211
  %v324 = vpop.f32.mrb[0].mxu0
  %v325 = vadd.f32 0.0, %v324
  %v326 = vpop.f32.mrb[0].mxu0
  %v327 = vpop.f32.mrb[0].mxu0
  %v328 = vadd.f32 0.0, %v327
  %v329 = vpop.f32.mrb[0].mxu0
  %330 = vmatprep.mubr.bf16.mxu0 0
  %331 = vmatmul.mubr.bf16.gmra.mrb[0].mxu0 %v212
  %v332 = vpop.f32.mrb[0].mxu0
  %v333 = vadd.f32 0.0, %v332
  %v334 = vpop.f32.mrb[0].mxu0
  %v335 = vpop.f32.mrb[0].mxu0
  %v336 = vadd.f32 0.0, %v335
  %v337 = vpop.f32.mrb[0].mxu0
  %338 = vmatprep.mubr.bf16.mxu0 0
  %339 = vmatmul.mubr.bf16.gmra.mrb[0].mxu0 %v213
  %v340 = vpop.f32.mrb[0].mxu0
  %v341 = vadd.f32 0.0, %v340
  %v342 = vpop.f32.mrb[0].mxu0
  %v343 = vpop.f32.mrb[0].mxu0
  %v344 = vadd.f32 0.0, %v343
  %v345 = vpop.f32.mrb[0].mxu0
  %346 = vmatprep.mubr.bf16.mxu0 0
  %347 = vmatmul.mubr.bf16.gmra.mrb[0].mxu0 %v214
  %v348 = vpop.f32.mrb[0].mxu0
  %v349 = vadd.f32 0.0, %v348
  %v350 = vpop.f32.mrb[0].mxu0
  %v351 = vpop.f32.mrb[0].mxu0
  %v352 = vadd.f32 0.0, %v351
  %v353 = vpop.f32.mrb[0].mxu0
  %354 = vmatprep.mubr.bf16.mxu0 0
  %355 = vmatmul.mubr.bf16.gmra.mrb[0].mxu0 %v215
  %v356 = vpop.f32.mrb[0].mxu0
  %v357 = vadd.f32 0.0, %v356
  %v358 = vpop.f32.mrb[0].mxu0
  %v359 = vpop.f32.mrb[0].mxu0
  %v360 = vadd.f32 0.0, %v359
  %v361 = vpop.f32.mrb[0].mxu0
  %362 = vmatprep.mubr.bf16.mxu0 0
  %363 = vmatmul.mubr.bf16.gmra.mrb[0].mxu0 %v216
  %v364 = vpop.f32.mrb[0].mxu0
  %v365 = vadd.f32 0.0, %v364
  %v366 = vpop.f32.mrb[0].mxu0
  %v367 = vpop.f32.mrb[0].mxu0
  %v368 = vadd.f32 0.0, %v367
  %v369 = vpop.f32.mrb[0].mxu0
  %370 = vmatprep.mubr.bf16.mxu0 0
  %371 = vmatmul.mubr.bf16.gmra.mrb[0].mxu0 %v217
  %v372 = vpop.f32.mrb[0].mxu0
  %v373 = vadd.f32 0.0, %v372
  %v374 = vpop.f32.mrb[0].mxu0
  %v375 = vpop.f32.mrb[0].mxu0
  %v376 = vadd.f32 0.0, %v375
  %v377 = vpop.f32.mrb[0].mxu0
  %378 = vdwg.mxu0
  %380 = vset.pattern.permute.xlu0 0
  %381 = vperm.xlu0 %380, %v194
  %v382 = vpop.permute.xlu0 %381
  %385 = vset.pattern.permute.xlu0 0
  %386 = vperm.xlu0 %385, %v195
  %v387 = vpop.permute.xlu0 %386
  %390 = vset.pattern.permute.xlu0 0
  %391 = vperm.xlu0 %390, %v196
  %v392 = vpop.permute.xlu0 %391
  %395 = vset.pattern.permute.xlu0 0
  %396 = vperm.xlu0 %395, %v197
  %v397 = vpop.permute.xlu0 %396
  %400 = vset.pattern.permute.xlu0 0
  %401 = vperm.xlu0 %400, %v198
  %v402 = vpop.permute.xlu0 %401
  %405 = vset.pattern.permute.xlu0 0
  %406 = vperm.xlu0 %405, %v199
  %v407 = vpop.permute.xlu0 %406
  %410 = vset.pattern.permute.xlu0 0
  %411 = vperm.xlu0 %410, %v200
  %v412 = vpop.permute.xlu0 %411
  %415 = vset.pattern.permute.xlu0 0
  %416 = vperm.xlu0 %415, %v201
  %v417 = vpop.permute.xlu0 %416
  %420 = vset.pattern.permute.xlu0 0
  %421 = vperm.xlu0 %420, %v202
  %v422 = vpop.permute.xlu0 %421
  %425 = vset.pattern.permute.xlu0 0
  %426 = vperm.xlu0 %425, %v203
  %v427 = vpop.permute.xlu0 %426
  %430 = vset.pattern.permute.xlu0 0
  %431 = vperm.xlu0 %430, %v204
  %v432 = vpop.permute.xlu0 %431
  %435 = vset.pattern.permute.xlu0 0
  %436 = vperm.xlu0 %435, %v205
  %v437 = vpop.permute.xlu0 %436
  %440 = vset.pattern.permute.xlu0 0
  %441 = vperm.xlu0 %440, %v206
  %v442 = vpop.permute.xlu0 %441
  %445 = vset.pattern.permute.xlu0 0
  %446 = vperm.xlu0 %445, %v207
  %v447 = vpop.permute.xlu0 %446
  %450 = vset.pattern.permute.xlu0 0
  %451 = vperm.xlu0 %450, %v208
  %v452 = vpop.permute.xlu0 %451
  %455 = vset.pattern.permute.xlu0 0
  %456 = vperm.xlu0 %455, %v209
  %v457 = vpop.permute.xlu0 %456
  %v459 = vmul.f32 %v382, %v317
  %v460 = vmul.f32 %v387, %v320
  %v461 = vmul.f32 %v392, %v325
  %v462 = vmul.f32 %v397, %v328
  %v463 = vmul.f32 %v402, %v333
  %v464 = vmul.f32 %v407, %v336
  %v465 = vmul.f32 %v412, %v341
  %v466 = vmul.f32 %v417, %v344
  %v467 = vmul.f32 %v422, %v349
  %v468 = vmul.f32 %v427, %v352
  %v469 = vmul.f32 %v432, %v357
  %v470 = vmul.f32 %v437, %v360
  %v471 = vmul.f32 %v442, %v365
  %v472 = vmul.f32 %v447, %v368
  %v473 = vmul.f32 %v452, %v373
  %v474 = vmul.f32 %v457, %v376
  %v475 = vld [vmem:[%s3] sm:$0x1]
  %v477 = vlaneseq
  %v478 = vshrl.u32 %v477, 7
  %v479 = vsub.s32 0, %v478
  %v480 = vrot.slane %v475, %v479
  %v482 = vadd.f32 %v459, %v480
  %v483 = vadd.f32 %v460, %v480
  %v484 = vadd.f32 %v461, %v480
  %v485 = vadd.f32 %v462, %v480
  %v486 = vadd.f32 %v463, %v480
  %v487 = vadd.f32 %v464, %v480
  %v488 = vadd.f32 %v465, %v480
  %v489 = vadd.f32 %v466, %v480
  %v490 = vadd.f32 %v467, %v480
  %v491 = vadd.f32 %v468, %v480
  %v492 = vadd.f32 %v469, %v480
  %v493 = vadd.f32 %v470, %v480
  %v494 = vadd.f32 %v471, %v480
  %v495 = vadd.f32 %v472, %v480
  %v496 = vadd.f32 %v473, %v480
  %v497 = vadd.f32 %v474, %v480
  %v498 = vmax.f32 %v482, 0.0
  %v499 = vmax.f32 %v483, 0.0
  %v500 = vmax.f32 %v484, 0.0
  %v501 = vmax.f32 %v485, 0.0
  %v502 = vmax.f32 %v486, 0.0
  %v503 = vmax.f32 %v487, 0.0
  %v504 = vmax.f32 %v488, 0.0
  %v505 = vmax.f32 %v489, 0.0
  %v506 = vmax.f32 %v490, 0.0
  %v507 = vmax.f32 %v491, 0.0
  %v508 = vmax.f32 %v492, 0.0
  %v509 = vmax.f32 %v493, 0.0
  %v510 = vmax.f32 %v494, 0.0
  %v511 = vmax.f32 %v495, 0.0
  %v512 = vmax.f32 %v496, 0.0
  %v513 = vmax.f32 %v497, 0.0
  %v514 = vmul.f32 %v498, %v382
  %v515 = vmul.f32 %v499, %v387
  %v516 = vmul.f32 %v500, %v392
  %v517 = vmul.f32 %v501, %v397
  %v518 = vmul.f32 %v502, %v402
  %v519 = vmul.f32 %v503, %v407
  %v520 = vmul.f32 %v504, %v412
  %v521 = vmul.f32 %v505, %v417
  %v522 = vmul.f32 %v506, %v422
  %v523 = vmul.f32 %v507, %v427
  %v524 = vmul.f32 %v508, %v432
  %v525 = vmul.f32 %v509, %v437
  %v526 = vmul.f32 %v510, %v442
  %v527 = vmul.f32 %v511, %v447
  %v528 = vmul.f32 %v512, %v452
  %v529 = vmul.f32 %v513, %v457
  %v530 = vpack.c.bf16 %v515, %v514
  %v531 = vpack.c.bf16 %v517, %v516
  %v532 = vpack.c.bf16 %v519, %v518
  %v533 = vpack.c.bf16 %v521, %v520
  %v534 = vpack.c.bf16 %v523, %v522
  %v535 = vpack.c.bf16 %v525, %v524
  %v536 = vpack.c.bf16 %v527, %v526
  %v537 = vpack.c.bf16 %v529, %v528
  %v546 = vunpack.c.l.b16 %v530
  %v547 = vunpack.c.h.b16 %v530
  %v548 = vunpack.c.l.b16 %v531
  %v549 = vunpack.c.h.b16 %v531
  %v550 = vunpack.c.l.b16 %v532
  %v551 = vunpack.c.h.b16 %v532
  %v552 = vunpack.c.l.b16 %v533
  %v553 = vunpack.c.h.b16 %v533
  %v554 = vunpack.c.l.b16 %v534
  %v555 = vunpack.c.h.b16 %v534
  %v556 = vunpack.c.l.b16 %v535
  %v557 = vunpack.c.h.b16 %v535
  %v558 = vunpack.c.l.b16 %v536
  %v559 = vunpack.c.h.b16 %v536
  %v560 = vunpack.c.l.b16 %v537
  %v561 = vunpack.c.h.b16 %v537
  %v562 = vpack.c.b16 %v546, %v546
  %v563 = vpack.c.b16 %v547, %v547
  %v564 = vpack.c.b16 %v548, %v548
  %v565 = vpack.c.b16 %v549, %v549
  %v566 = vpack.c.b16 %v550, %v550
  %v567 = vpack.c.b16 %v551, %v551
  %v568 = vpack.c.b16 %v552, %v552
  %v569 = vpack.c.b16 %v553, %v553
  %v570 = vpack.c.b16 %v554, %v554
  %v571 = vpack.c.b16 %v555, %v555
  %v572 = vpack.c.b16 %v556, %v556
  %v573 = vpack.c.b16 %v557, %v557
  %v574 = vpack.c.b16 %v558, %v558
  %v575 = vpack.c.b16 %v559, %v559
  %v576 = vpack.c.b16 %v560, %v560
  %v577 = vpack.c.b16 %v561, %v561
  %594 = vst [vmem:[%s5] sm:$0xf] %v562
  %595 = vst [vmem:[%s5 + $0x4] sm:$0xf] %v563
  %596 = vst [vmem:[%s5 + $0x8] sm:$0xf] %v564
  %597 = vst [vmem:[%s5 + $0xc] sm:$0xf] %v565
  %598 = vst [vmem:[%s5 + $0x10] sm:$0xf] %v566
  %599 = vst [vmem:[%s5 + $0x14] sm:$0xf] %v567
  %600 = vst [vmem:[%s5 + $0x18] sm:$0xf] %v568
  %601 = vst [vmem:[%s5 + $0x1c] sm:$0xf] %v569
  %602 = vst [vmem:[%s5 + $0x20] sm:$0xf] %v570
  %603 = vst [vmem:[%s5 + $0x24] sm:$0xf] %v571
  %604 = vst [vmem:[%s5 + $0x28] sm:$0xf] %v572
  %605 = vst [vmem:[%s5 + $0x2c] sm:$0xf] %v573
  %606 = vst [vmem:[%s5 + $0x30] sm:$0xf] %v574
  %607 = vst [vmem:[%s5 + $0x34] sm:$0xf] %v575
  %608 = vst [vmem:[%s5 + $0x38] sm:$0xf] %v576
  %609 = vst [vmem:[%s5 + $0x3c] sm:$0xf] %v577
  // Predicated region
  $region22: #{gcn_regression_forward.3} parent=0 // pred_check
    _
  $region23: #{gcn_regression_forward.3} parent=0 // pred_check_branch
    %611 = sbr.rel (0) target = $region25
  $region24: #{gcn_regression_forward.3} parent=0 // pred_region
    _
  $region25: #{gcn_regression_forward.3} parent=0 // pred_fallthru
    _
  // Predicated region
  $region26: #{gcn_regression_forward.3} parent=0 // pred_check
    _
  $region27: #{gcn_regression_forward.3} parent=0 // pred_check_branch
    %613 = sbr.rel (0) target = $region29
  $region28: #{gcn_regression_forward.3} parent=0 // pred_region
    _
  $region29: #{gcn_regression_forward.3} parent=0 // pred_fallthru
    _

// kernel: gcn_regression_forward.5
$region0: #{gcn_regression_forward.5}
  #allocation0 [shape = 'u32[]', space=smem, size = 0x4, offset = 0x4, fixed_abs, tag = 'smem constant byte address 0x4 - core index']
  #allocation1 [shape = 'u32[144,128]{1,0:T(1,128)}', space=vmem, size = 0x12000, scoped, tag = 'internal scratch']
  #allocation2 [shape = 'f32[8,128]{1,0:T(8,128)}', space=vmem, size = 0x1000, scoped, tag = 'scratch operand']
  %s0 = inlined_call_operand.vmem [shape: s8[128,128], index: 0, kind: input, shape index: {}]
  %s1 = inlined_call_operand.vmem [shape: bf16[128,128], index: 1, kind: input, shape index: {}]
  %s2 = inlined_call_operand.vmem [shape: bf16[128,128], index: 2, kind: input, shape index: {}]
  %s3 = inlined_call_operand.vmem [shape: f32[1,128], index: 3, kind: input, shape index: {}]
  %s4 = inlined_call_operand.vmem [shape: f32[128,1], index: 4, kind: input, shape index: {}]
  %s5 = inlined_call_operand.vmem [shape: f32[8,128], index: 5, kind: input, shape index: {}]
  %s6 = inlined_call_operand.vmem [shape: f32[128,128], index: 6, kind: input, shape index: {}]
  %s7 = inlined_call_operand.vmem [shape: f32[1,128], index: 7, kind: input, shape index: {}]
  %s8 = inlined_call_operand.vmem [shape: f32[8,128], index: 8, kind: output, shape index: {}]
  %s9 = sld [smem:[#allocation0]]
  $region50: #{gcn_regression_forward.5} parent=0
    _
  %s11 = ssub.s32 1, %s9
  %s12 = scalar_select 0, %s11, %s9
  // Predicated region
  $region2: #{gcn_regression_forward.5} parent=0 // pred_check
    _
  $region3: #{gcn_regression_forward.5} parent=0 // pred_check_branch
    %14 = sbr.rel (0) target = $region5
  $region4: #{gcn_regression_forward.5} parent=0 // pred_region
    _
  $region5: #{gcn_regression_forward.5} parent=0 // pred_fallthru
    _
  // Predicated region
  $region6: #{gcn_regression_forward.5} parent=0 // pred_check
    _
  $region7: #{gcn_regression_forward.5} parent=0 // pred_check_branch
    %16 = sbr.rel (0) target = $region9
  $region8: #{gcn_regression_forward.5} parent=0 // pred_region
    _
  $region9: #{gcn_regression_forward.5} parent=0 // pred_fallthru
    _
  // Predicated region
  $region10: #{gcn_regression_forward.5} parent=0 // pred_check
    _
  $region11: #{gcn_regression_forward.5} parent=0 // pred_check_branch
    %18 = sbr.rel (0) target = $region13
  $region12: #{gcn_regression_forward.5} parent=0 // pred_region
    _
  $region13: #{gcn_regression_forward.5} parent=0 // pred_fallthru
    _
  // Predicated region
  $region14: #{gcn_regression_forward.5} parent=0 // pred_check
    _
  $region15: #{gcn_regression_forward.5} parent=0 // pred_check_branch
    %20 = sbr.rel (0) target = $region17
  $region16: #{gcn_regression_forward.5} parent=0 // pred_region
    _
  $region17: #{gcn_regression_forward.5} parent=0 // pred_fallthru
    _
  // Predicated region
  $region18: #{gcn_regression_forward.5} parent=0 // pred_check
    _
  $region19: #{gcn_regression_forward.5} parent=0 // pred_check_branch
    %22 = sbr.rel (0) target = $region21
  $region20: #{gcn_regression_forward.5} parent=0 // pred_region
    _
  $region21: #{gcn_regression_forward.5} parent=0 // pred_fallthru
    _
  // Predicated region
  $region22: #{gcn_regression_forward.5} parent=0 // pred_check
    _
  $region23: #{gcn_regression_forward.5} parent=0 // pred_check_branch
    %24 = sbr.rel (0) target = $region25
  $region24: #{gcn_regression_forward.5} parent=0 // pred_region
    _
  $region25: #{gcn_regression_forward.5} parent=0 // pred_fallthru
    _
  // Predicated region
  $region26: #{gcn_regression_forward.5} parent=0 // pred_check
    _
  $region27: #{gcn_regression_forward.5} parent=0 // pred_check_branch
    %26 = sbr.rel (0) target = $region29
  $region28: #{gcn_regression_forward.5} parent=0 // pred_region
    _
  $region29: #{gcn_regression_forward.5} parent=0 // pred_fallthru
    _
  // Predicated region
  $region30: #{gcn_regression_forward.5} parent=0 // pred_check
    _
  $region31: #{gcn_regression_forward.5} parent=0 // pred_check_branch
    %28 = sbr.rel (0) target = $region33
  $region32: #{gcn_regression_forward.5} parent=0 // pred_region
    _
  $region33: #{gcn_regression_forward.5} parent=0 // pred_fallthru
    _
  %p30 = scmp.eq.s32.totalorder 0, 0
  // Predicated region
  $region34: #{gcn_regression_forward.5} parent=0 // pred_check
    %p31 = pneg %p30
  $region35: #{gcn_regression_forward.5} parent=0 // pred_check_branch
    %33 = sbr.rel (%p31) target = $region37
  $region36: #{gcn_regression_forward.5} parent=0 // pred_region
    %34 = vst [vmem:[#allocation2] sm:$0xff] 0.0
  $region37: #{gcn_regression_forward.5} parent=0 // pred_fallthru
    _
  %v35 = vld [vmem:[%s0] sm:$0xff]
  %v36 = vld [vmem:[%s0 + $0x8] sm:$0xff]
  %v37 = vld [vmem:[%s0 + $0x10] sm:$0xff]
  %v38 = vld [vmem:[%s0 + $0x18] sm:$0xff]
  %v39 = vunpack.c.l.s8.bf16 %v35
  %v40 = vunpack.c.h.s8.bf16 %v35
  %v41 = vunpack.c.l.s8.bf16 %v36
  %v42 = vunpack.c.h.s8.bf16 %v36
  %v43 = vunpack.c.l.s8.bf16 %v37
  %v44 = vunpack.c.h.s8.bf16 %v37
  %v45 = vunpack.c.l.s8.bf16 %v38
  %v46 = vunpack.c.h.s8.bf16 %v38
  %v47 = vld [vmem:[%s1] sm:$0xf]
  %v48 = vld [vmem:[%s1 + $0x4] sm:$0xf]
  %v49 = vld [vmem:[%s1 + $0x8] sm:$0xf]
  %v50 = vld [vmem:[%s1 + $0xc] sm:$0xf]
  %v51 = vld [vmem:[%s1 + $0x10] sm:$0xf]
  %v52 = vld [vmem:[%s1 + $0x14] sm:$0xf]
  %v53 = vld [vmem:[%s1 + $0x18] sm:$0xf]
  %v54 = vld [vmem:[%s1 + $0x1c] sm:$0xf]
  %v55 = vld [vmem:[%s1 + $0x20] sm:$0xf]
  %v56 = vld [vmem:[%s1 + $0x24] sm:$0xf]
  %v57 = vld [vmem:[%s1 + $0x28] sm:$0xf]
  %v58 = vld [vmem:[%s1 + $0x2c] sm:$0xf]
  %v59 = vld [vmem:[%s1 + $0x30] sm:$0xf]
  %v60 = vld [vmem:[%s1 + $0x34] sm:$0xf]
  %v61 = vld [vmem:[%s1 + $0x38] sm:$0xf]
  %v62 = vld [vmem:[%s1 + $0x3c] sm:$0xf]
  %v79 = vunpack.c.l.b16 %v47
  %v80 = vunpack.c.l.b16 %v48
  %v81 = vunpack.c.l.b16 %v49
  %v82 = vunpack.c.l.b16 %v50
  %v83 = vunpack.c.l.b16 %v51
  %v84 = vunpack.c.l.b16 %v52
  %v85 = vunpack.c.l.b16 %v53
  %v86 = vunpack.c.l.b16 %v54
  %v87 = vunpack.c.l.b16 %v55
  %v88 = vunpack.c.l.b16 %v56
  %v89 = vunpack.c.l.b16 %v57
  %v90 = vunpack.c.l.b16 %v58
  %v91 = vunpack.c.l.b16 %v59
  %v92 = vunpack.c.l.b16 %v60
  %v93 = vunpack.c.l.b16 %v61
  %v94 = vunpack.c.l.b16 %v62
  %v95 = vpack.c.b16 %v80, %v79
  %v96 = vpack.c.b16 %v82, %v81
  %v97 = vpack.c.b16 %v84, %v83
  %v98 = vpack.c.b16 %v86, %v85
  %v99 = vpack.c.b16 %v88, %v87
  %v100 = vpack.c.b16 %v90, %v89
  %v101 = vpack.c.b16 %v92, %v91
  %v102 = vpack.c.b16 %v94, %v93
  %111 = vmatprep.subr.bf16.mxu0 0
  %112 = vmatpush1.bf16.msra.mxu0 %v95
  %113 = vmatprep.subr.bf16.mxu0 0
  %114 = vmatpush1.bf16.msra.mxu0 %v96
  %115 = vmatprep.subr.bf16.mxu0 0
  %116 = vmatpush1.bf16.msra.mxu0 %v97
  %117 = vmatprep.subr.bf16.mxu0 0
  %118 = vmatpush1.bf16.msra.mxu0 %v98
  %119 = vmatprep.subr.bf16.mxu0 0
  %120 = vmatpush1.bf16.msra.mxu0 %v99
  %121 = vmatprep.subr.bf16.mxu0 0
  %122 = vmatpush1.bf16.msra.mxu0 %v100
  %123 = vmatprep.subr.bf16.mxu0 0
  %124 = vmatpush1.bf16.msra.mxu0 %v101
  %125 = vmatprep.subr.bf16.mxu0 0
  %126 = vmatpush1.bf16.msra.mxu0 %v102
  %127 = vmatprep.subr.bf16.mxu0 0
  %128 = vmatpush1.bf16.msra.mxu0 0
  %129 = vmatprep.subr.bf16.mxu0 0
  %130 = vmatpush1.bf16.msra.mxu0 0
  %131 = vmatprep.subr.bf16.mxu0 0
  %132 = vmatpush1.bf16.msra.mxu0 0
  %133 = vmatprep.subr.bf16.mxu0 0
  %134 = vmatpush1.bf16.msra.mxu0 0
  %135 = vmatprep.subr.bf16.mxu0 0
  %136 = vmatpush1.bf16.msra.mxu0 0
  %137 = vmatprep.subr.bf16.mxu0 0
  %138 = vmatpush1.bf16.msra.mxu0 0
  %139 = vmatprep.subr.bf16.mxu0 0
  %140 = vmatpush1.bf16.msra.mxu0 0
  %141 = vmatprep.subr.bf16.mxu0 0
  %142 = vmatpush1.bf16.msra.mxu0 0
  %143 = vmatprep.mubr.bf16.mxu0 0
  %144 = vmatmul.mubr.bf16.gmra.mrb[0].mxu0 %v39
  %v145 = vpop.f32.mrb[0].mxu0
  %v146 = vadd.f32 0.0, %v145
  %v147 = vpop.f32.mrb[0].mxu0
  %v148 = vpop.f32.mrb[0].mxu0
  %v149 = vadd.f32 0.0, %v148
  %v150 = vpop.f32.mrb[0].mxu0
  %151 = vmatprep.mubr.bf16.mxu0 0
  %152 = vmatmul.mubr.bf16.gmra.mrb[0].mxu0 %v40
  %v153 = vpop.f32.mrb[0].mxu0
  %v154 = vadd.f32 0.0, %v153
  %v155 = vpop.f32.mrb[0].mxu0
  %v156 = vpop.f32.mrb[0].mxu0
  %v157 = vadd.f32 0.0, %v156
  %v158 = vpop.f32.mrb[0].mxu0
  %159 = vmatprep.mubr.bf16.mxu0 0
  %160 = vmatmul.mubr.bf16.gmra.mrb[0].mxu0 %v41
  %v161 = vpop.f32.mrb[0].mxu0
  %v162 = vadd.f32 0.0, %v161
  %v163 = vpop.f32.mrb[0].mxu0
  %v164 = vpop.f32.mrb[0].mxu0
  %v165 = vadd.f32 0.0, %v164
  %v166 = vpop.f32.mrb[0].mxu0
  %167 = vmatprep.mubr.bf16.mxu0 0
  %168 = vmatmul.mubr.bf16.gmra.mrb[0].mxu0 %v42
  %v169 = vpop.f32.mrb[0].mxu0
  %v170 = vadd.f32 0.0, %v169
  %v171 = vpop.f32.mrb[0].mxu0
  %v172 = vpop.f32.mrb[0].mxu0
  %v173 = vadd.f32 0.0, %v172
  %v174 = vpop.f32.mrb[0].mxu0
  %175 = vmatprep.mubr.bf16.mxu0 0
  %176 = vmatmul.mubr.bf16.gmra.mrb[0].mxu0 %v43
  %v177 = vpop.f32.mrb[0].mxu0
  %v178 = vadd.f32 0.0, %v177
  %v179 = vpop.f32.mrb[0].mxu0
  %v180 = vpop.f32.mrb[0].mxu0
  %v181 = vadd.f32 0.0, %v180
  %v182 = vpop.f32.mrb[0].mxu0
  %183 = vmatprep.mubr.bf16.mxu0 0
  %184 = vmatmul.mubr.bf16.gmra.mrb[0].mxu0 %v44
  %v185 = vpop.f32.mrb[0].mxu0
  %v186 = vadd.f32 0.0, %v185
  %v187 = vpop.f32.mrb[0].mxu0
  %v188 = vpop.f32.mrb[0].mxu0
  %v189 = vadd.f32 0.0, %v188
  %v190 = vpop.f32.mrb[0].mxu0
  %191 = vmatprep.mubr.bf16.mxu0 0
  %192 = vmatmul.mubr.bf16.gmra.mrb[0].mxu0 %v45
  %v193 = vpop.f32.mrb[0].mxu0
  %v194 = vadd.f32 0.0, %v193
  %v195 = vpop.f32.mrb[0].mxu0
  %v196 = vpop.f32.mrb[0].mxu0
  %v197 = vadd.f32 0.0, %v196
  %v198 = vpop.f32.mrb[0].mxu0
  %199 = vmatprep.mubr.bf16.mxu0 0
  %200 = vmatmul.mubr.bf16.gmra.mrb[0].mxu0 %v46
  %v201 = vpop.f32.mrb[0].mxu0
  %v202 = vadd.f32 0.0, %v201
  %v203 = vpop.f32.mrb[0].mxu0
  %v204 = vpop.f32.mrb[0].mxu0
  %v205 = vadd.f32 0.0, %v204
  %v206 = vpop.f32.mrb[0].mxu0
  %207 = vdwg.mxu0
  %v208 = vld [vmem:[%s4] sm:$0xff]
  %v209 = vld [vmem:[%s4 + $0x8] sm:$0xff]
  %v210 = vld [vmem:[%s4 + $0x10] sm:$0xff]
  %v211 = vld [vmem:[%s4 + $0x18] sm:$0xff]
  %v212 = vld [vmem:[%s4 + $0x20] sm:$0xff]
  %v213 = vld [vmem:[%s4 + $0x28] sm:$0xff]
  %v214 = vld [vmem:[%s4 + $0x30] sm:$0xff]
  %v215 = vld [vmem:[%s4 + $0x38] sm:$0xff]
  %v216 = vld [vmem:[%s4 + $0x40] sm:$0xff]
  %v217 = vld [vmem:[%s4 + $0x48] sm:$0xff]
  %v218 = vld [vmem:[%s4 + $0x50] sm:$0xff]
  %v219 = vld [vmem:[%s4 + $0x58] sm:$0xff]
  %v220 = vld [vmem:[%s4 + $0x60] sm:$0xff]
  %v221 = vld [vmem:[%s4 + $0x68] sm:$0xff]
  %v222 = vld [vmem:[%s4 + $0x70] sm:$0xff]
  %v223 = vld [vmem:[%s4 + $0x78] sm:$0xff]
  %v224 = vpack.c.bf16 %v149, %v146
  %v225 = vpack.c.bf16 %v157, %v154
  %v226 = vpack.c.bf16 %v165, %v162
  %v227 = vpack.c.bf16 %v173, %v170
  %v228 = vpack.c.bf16 %v181, %v178
  %v229 = vpack.c.bf16 %v189, %v186
  %v230 = vpack.c.bf16 %v197, %v194
  %v231 = vpack.c.bf16 %v205, %v202
  %v232 = vld [vmem:[%s2] sm:$0xf]
  %v233 = vld [vmem:[%s2 + $0x4] sm:$0xf]
  %v234 = vld [vmem:[%s2 + $0x8] sm:$0xf]
  %v235 = vld [vmem:[%s2 + $0xc] sm:$0xf]
  %v236 = vld [vmem:[%s2 + $0x10] sm:$0xf]
  %v237 = vld [vmem:[%s2 + $0x14] sm:$0xf]
  %v238 = vld [vmem:[%s2 + $0x18] sm:$0xf]
  %v239 = vld [vmem:[%s2 + $0x1c] sm:$0xf]
  %v240 = vld [vmem:[%s2 + $0x20] sm:$0xf]
  %v241 = vld [vmem:[%s2 + $0x24] sm:$0xf]
  %v242 = vld [vmem:[%s2 + $0x28] sm:$0xf]
  %v243 = vld [vmem:[%s2 + $0x2c] sm:$0xf]
  %v244 = vld [vmem:[%s2 + $0x30] sm:$0xf]
  %v245 = vld [vmem:[%s2 + $0x34] sm:$0xf]
  %v246 = vld [vmem:[%s2 + $0x38] sm:$0xf]
  %v247 = vld [vmem:[%s2 + $0x3c] sm:$0xf]
  %v264 = vunpack.c.l.b16 %v232
  %v265 = vunpack.c.l.b16 %v233
  %v266 = vunpack.c.l.b16 %v234
  %v267 = vunpack.c.l.b16 %v235
  %v268 = vunpack.c.l.b16 %v236
  %v269 = vunpack.c.l.b16 %v237
  %v270 = vunpack.c.l.b16 %v238
  %v271 = vunpack.c.l.b16 %v239
  %v272 = vunpack.c.l.b16 %v240
  %v273 = vunpack.c.l.b16 %v241
  %v274 = vunpack.c.l.b16 %v242
  %v275 = vunpack.c.l.b16 %v243
  %v276 = vunpack.c.l.b16 %v244
  %v277 = vunpack.c.l.b16 %v245
  %v278 = vunpack.c.l.b16 %v246
  %v279 = vunpack.c.l.b16 %v247
  %v280 = vpack.c.b16 %v265, %v264
  %v281 = vpack.c.b16 %v267, %v266
  %v282 = vpack.c.b16 %v269, %v268
  %v283 = vpack.c.b16 %v271, %v270
  %v284 = vpack.c.b16 %v273, %v272
  %v285 = vpack.c.b16 %v275, %v274
  %v286 = vpack.c.b16 %v277, %v276
  %v287 = vpack.c.b16 %v279, %v278
  %296 = vmatprep.subr.bf16.mxu0 0
  %297 = vmatpush1.bf16.msra.mxu0 %v280
  %298 = vmatprep.subr.bf16.mxu0 0
  %299 = vmatpush1.bf16.msra.mxu0 %v281
  %300 = vmatprep.subr.bf16.mxu0 0
  %301 = vmatpush1.bf16.msra.mxu0 %v282
  %302 = vmatprep.subr.bf16.mxu0 0
  %303 = vmatpush1.bf16.msra.mxu0 %v283
  %304 = vmatprep.subr.bf16.mxu0 0
  %305 = vmatpush1.bf16.msra.mxu0 %v284
  %306 = vmatprep.subr.bf16.mxu0 0
  %307 = vmatpush1.bf16.msra.mxu0 %v285
  %308 = vmatprep.subr.bf16.mxu0 0
  %309 = vmatpush1.bf16.msra.mxu0 %v286
  %310 = vmatprep.subr.bf16.mxu0 0
  %311 = vmatpush1.bf16.msra.mxu0 %v287
  %312 = vmatprep.subr.bf16.mxu0 0
  %313 = vmatpush1.bf16.msra.mxu0 0
  %314 = vmatprep.subr.bf16.mxu0 0
  %315 = vmatpush1.bf16.msra.mxu0 0
  %316 = vmatprep.subr.bf16.mxu0 0
  %317 = vmatpush1.bf16.msra.mxu0 0
  %318 = vmatprep.subr.bf16.mxu0 0
  %319 = vmatpush1.bf16.msra.mxu0 0
  %320 = vmatprep.subr.bf16.mxu0 0
  %321 = vmatpush1.bf16.msra.mxu0 0
  %322 = vmatprep.subr.bf16.mxu0 0
  %323 = vmatpush1.bf16.msra.mxu0 0
  %324 = vmatprep.subr.bf16.mxu0 0
  %325 = vmatpush1.bf16.msra.mxu0 0
  %326 = vmatprep.subr.bf16.mxu0 0
  %327 = vmatpush1.bf16.msra.mxu0 0
  %328 = vmatprep.mubr.bf16.mxu0 0
  %329 = vmatmul.mubr.bf16.gmra.mrb[0].mxu0 %v224
  %v330 = vpop.f32.mrb[0].mxu0
  %v331 = vadd.f32 0.0, %v330
  %v332 = vpop.f32.mrb[0].mxu0
  %v333 = vpop.f32.mrb[0].mxu0
  %v334 = vadd.f32 0.0, %v333
  %v335 = vpop.f32.mrb[0].mxu0
  %336 = vmatprep.mubr.bf16.mxu0 0
  %337 = vmatmul.mubr.bf16.gmra.mrb[0].mxu0 %v225
  %v338 = vpop.f32.mrb[0].mxu0
  %v339 = vadd.f32 0.0, %v338
  %v340 = vpop.f32.mrb[0].mxu0
  %v341 = vpop.f32.mrb[0].mxu0
  %v342 = vadd.f32 0.0, %v341
  %v343 = vpop.f32.mrb[0].mxu0
  %344 = vmatprep.mubr.bf16.mxu0 0
  %345 = vmatmul.mubr.bf16.gmra.mrb[0].mxu0 %v226
  %v346 = vpop.f32.mrb[0].mxu0
  %v347 = vadd.f32 0.0, %v346
  %v348 = vpop.f32.mrb[0].mxu0
  %v349 = vpop.f32.mrb[0].mxu0
  %v350 = vadd.f32 0.0, %v349
  %v351 = vpop.f32.mrb[0].mxu0
  %352 = vmatprep.mubr.bf16.mxu0 0
  %353 = vmatmul.mubr.bf16.gmra.mrb[0].mxu0 %v227
  %v354 = vpop.f32.mrb[0].mxu0
  %v355 = vadd.f32 0.0, %v354
  %v356 = vpop.f32.mrb[0].mxu0
  %v357 = vpop.f32.mrb[0].mxu0
  %v358 = vadd.f32 0.0, %v357
  %v359 = vpop.f32.mrb[0].mxu0
  %360 = vmatprep.mubr.bf16.mxu0 0
  %361 = vmatmul.mubr.bf16.gmra.mrb[0].mxu0 %v228
  %v362 = vpop.f32.mrb[0].mxu0
  %v363 = vadd.f32 0.0, %v362
  %v364 = vpop.f32.mrb[0].mxu0
  %v365 = vpop.f32.mrb[0].mxu0
  %v366 = vadd.f32 0.0, %v365
  %v367 = vpop.f32.mrb[0].mxu0
  %368 = vmatprep.mubr.bf16.mxu0 0
  %369 = vmatmul.mubr.bf16.gmra.mrb[0].mxu0 %v229
  %v370 = vpop.f32.mrb[0].mxu0
  %v371 = vadd.f32 0.0, %v370
  %v372 = vpop.f32.mrb[0].mxu0
  %v373 = vpop.f32.mrb[0].mxu0
  %v374 = vadd.f32 0.0, %v373
  %v375 = vpop.f32.mrb[0].mxu0
  %376 = vmatprep.mubr.bf16.mxu0 0
  %377 = vmatmul.mubr.bf16.gmra.mrb[0].mxu0 %v230
  %v378 = vpop.f32.mrb[0].mxu0
  %v379 = vadd.f32 0.0, %v378
  %v380 = vpop.f32.mrb[0].mxu0
  %v381 = vpop.f32.mrb[0].mxu0
  %v382 = vadd.f32 0.0, %v381
  %v383 = vpop.f32.mrb[0].mxu0
  %384 = vmatprep.mubr.bf16.mxu0 0
  %385 = vmatmul.mubr.bf16.gmra.mrb[0].mxu0 %v231
  %v386 = vpop.f32.mrb[0].mxu0
  %v387 = vadd.f32 0.0, %v386
  %v388 = vpop.f32.mrb[0].mxu0
  %v389 = vpop.f32.mrb[0].mxu0
  %v390 = vadd.f32 0.0, %v389
  %v391 = vpop.f32.mrb[0].mxu0
  %392 = vdwg.mxu0
  %394 = vset.pattern.permute.xlu0 0
  %395 = vperm.xlu0 %394, %v208
  %v396 = vpop.permute.xlu0 %395
  %399 = vset.pattern.permute.xlu0 0
  %400 = vperm.xlu0 %399, %v209
  %v401 = vpop.permute.xlu0 %400
  %404 = vset.pattern.permute.xlu0 0
  %405 = vperm.xlu0 %404, %v210
  %v406 = vpop.permute.xlu0 %405
  %409 = vset.pattern.permute.xlu0 0
  %410 = vperm.xlu0 %409, %v211
  %v411 = vpop.permute.xlu0 %410
  %414 = vset.pattern.permute.xlu0 0
  %415 = vperm.xlu0 %414, %v212
  %v416 = vpop.permute.xlu0 %415
  %419 = vset.pattern.permute.xlu0 0
  %420 = vperm.xlu0 %419, %v213
  %v421 = vpop.permute.xlu0 %420
  %424 = vset.pattern.permute.xlu0 0
  %425 = vperm.xlu0 %424, %v214
  %v426 = vpop.permute.xlu0 %425
  %429 = vset.pattern.permute.xlu0 0
  %430 = vperm.xlu0 %429, %v215
  %v431 = vpop.permute.xlu0 %430
  %434 = vset.pattern.permute.xlu0 0
  %435 = vperm.xlu0 %434, %v216
  %v436 = vpop.permute.xlu0 %435
  %439 = vset.pattern.permute.xlu0 0
  %440 = vperm.xlu0 %439, %v217
  %v441 = vpop.permute.xlu0 %440
  %444 = vset.pattern.permute.xlu0 0
  %445 = vperm.xlu0 %444, %v218
  %v446 = vpop.permute.xlu0 %445
  %449 = vset.pattern.permute.xlu0 0
  %450 = vperm.xlu0 %449, %v219
  %v451 = vpop.permute.xlu0 %450
  %454 = vset.pattern.permute.xlu0 0
  %455 = vperm.xlu0 %454, %v220
  %v456 = vpop.permute.xlu0 %455
  %459 = vset.pattern.permute.xlu0 0
  %460 = vperm.xlu0 %459, %v221
  %v461 = vpop.permute.xlu0 %460
  %464 = vset.pattern.permute.xlu0 0
  %465 = vperm.xlu0 %464, %v222
  %v466 = vpop.permute.xlu0 %465
  %469 = vset.pattern.permute.xlu0 0
  %470 = vperm.xlu0 %469, %v223
  %v471 = vpop.permute.xlu0 %470
  %v473 = vmul.f32 %v396, %v331
  %v474 = vmul.f32 %v401, %v334
  %v475 = vmul.f32 %v406, %v339
  %v476 = vmul.f32 %v411, %v342
  %v477 = vmul.f32 %v416, %v347
  %v478 = vmul.f32 %v421, %v350
  %v479 = vmul.f32 %v426, %v355
  %v480 = vmul.f32 %v431, %v358
  %v481 = vmul.f32 %v436, %v363
  %v482 = vmul.f32 %v441, %v366
  %v483 = vmul.f32 %v446, %v371
  %v484 = vmul.f32 %v451, %v374
  %v485 = vmul.f32 %v456, %v379
  %v486 = vmul.f32 %v461, %v382
  %v487 = vmul.f32 %v466, %v387
  %v488 = vmul.f32 %v471, %v390
  %v489 = vld [vmem:[%s3] sm:$0x1]
  %v491 = vlaneseq
  %v492 = vshrl.u32 %v491, 7
  %v493 = vsub.s32 0, %v492
  %v494 = vrot.slane %v489, %v493
  %v496 = vadd.f32 %v473, %v494
  %v497 = vadd.f32 %v474, %v494
  %v498 = vadd.f32 %v475, %v494
  %v499 = vadd.f32 %v476, %v494
  %v500 = vadd.f32 %v477, %v494
  %v501 = vadd.f32 %v478, %v494
  %v502 = vadd.f32 %v479, %v494
  %v503 = vadd.f32 %v480, %v494
  %v504 = vadd.f32 %v481, %v494
  %v505 = vadd.f32 %v482, %v494
  %v506 = vadd.f32 %v483, %v494
  %v507 = vadd.f32 %v484, %v494
  %v508 = vadd.f32 %v485, %v494
  %v509 = vadd.f32 %v486, %v494
  %v510 = vadd.f32 %v487, %v494
  %v511 = vadd.f32 %v488, %v494
  %v512 = vmax.f32 %v496, 0.0
  %v513 = vmax.f32 %v497, 0.0
  %v514 = vmax.f32 %v498, 0.0
  %v515 = vmax.f32 %v499, 0.0
  %v516 = vmax.f32 %v500, 0.0
  %v517 = vmax.f32 %v501, 0.0
  %v518 = vmax.f32 %v502, 0.0
  %v519 = vmax.f32 %v503, 0.0
  %v520 = vmax.f32 %v504, 0.0
  %v521 = vmax.f32 %v505, 0.0
  %v522 = vmax.f32 %v506, 0.0
  %v523 = vmax.f32 %v507, 0.0
  %v524 = vmax.f32 %v508, 0.0
  %v525 = vmax.f32 %v509, 0.0
  %v526 = vmax.f32 %v510, 0.0
  %v527 = vmax.f32 %v511, 0.0
  %v528 = vld [vmem:[#allocation2] sm:$0xff]
  %v529 = vld [vmem:[%s5] sm:$0xff]
  %530 = vmatprep.subr.mxu0 0.0
  %531 = vmatpush1.msra.mxu0 %v512
  %532 = vmatprep.subr.mxu0 0.0
  %533 = vmatpush1.msra.mxu0 %v513
  %534 = vmatprep.subr.mxu0 0.0
  %535 = vmatpush1.msra.mxu0 %v514
  %536 = vmatprep.subr.mxu0 0.0
  %537 = vmatpush1.msra.mxu0 %v515
  %538 = vmatprep.subr.mxu0 0.0
  %539 = vmatpush1.msra.mxu0 %v516
  %540 = vmatprep.subr.mxu0 0.0
  %541 = vmatpush1.msra.mxu0 %v517
  %542 = vmatprep.subr.mxu0 0.0
  %543 = vmatpush1.msra.mxu0 %v518
  %544 = vmatprep.subr.mxu0 0.0
  %545 = vmatpush1.msra.mxu0 %v519
  %546 = vmatprep.subr.mxu0 0.0
  %547 = vmatpush1.msra.mxu0 %v520
  %548 = vmatprep.subr.mxu0 0.0
  %549 = vmatpush1.msra.mxu0 %v521
  %550 = vmatprep.subr.mxu0 0.0
  %551 = vmatpush1.msra.mxu0 %v522
  %552 = vmatprep.subr.mxu0 0.0
  %553 = vmatpush1.msra.mxu0 %v523
  %554 = vmatprep.subr.mxu0 0.0
  %555 = vmatpush1.msra.mxu0 %v524
  %556 = vmatprep.subr.mxu0 0.0
  %557 = vmatpush1.msra.mxu0 %v525
  %558 = vmatprep.subr.mxu0 0.0
  %559 = vmatpush1.msra.mxu0 %v526
  %560 = vmatprep.subr.mxu0 0.0
  %561 = vmatpush1.msra.mxu0 %v527
  %562 = vmatprep.subr.mxu0 0.0
  %563 = vmatpush1.msra.mxu0 0.0
  %564 = vmatprep.subr.mxu0 0.0
  %565 = vmatpush1.msra.mxu0 0.0
  %566 = vmatprep.subr.mxu0 0.0
  %567 = vmatpush1.msra.mxu0 0.0
  %568 = vmatprep.subr.mxu0 0.0
  %569 = vmatpush1.msra.mxu0 0.0
  %570 = vmatprep.subr.mxu0 0.0
  %571 = vmatpush1.msra.mxu0 0.0
  %572 = vmatprep.subr.mxu0 0.0
  %573 = vmatpush1.msra.mxu0 0.0
  %574 = vmatprep.subr.mxu0 0.0
  %575 = vmatpush1.msra.mxu0 0.0
  %576 = vmatprep.subr.mxu0 0.0
  %577 = vmatpush1.msra.mxu0 0.0
  %578 = vmatprep.subr.mxu0 0.0
  %579 = vmatpush1.msra.mxu0 0.0
  %580 = vmatprep.subr.mxu0 0.0
  %581 = vmatpush1.msra.mxu0 0.0
  %582 = vmatprep.subr.mxu0 0.0
  %583 = vmatpush1.msra.mxu0 0.0
  %584 = vmatprep.subr.mxu0 0.0
  %585 = vmatpush1.msra.mxu0 0.0
  %586 = vmatprep.subr.mxu0 0.0
  %587 = vmatpush1.msra.mxu0 0.0
  %588 = vmatprep.subr.mxu0 0.0
  %589 = vmatpush1.msra.mxu0 0.0
  %590 = vmatprep.subr.mxu0 0.0
  %591 = vmatpush1.msra.mxu0 0.0
  %592 = vmatprep.subr.mxu0 0.0
  %593 = vmatpush1.msra.mxu0 0.0
  %594 = vmatprep.mubr.f32.mxu0 0.0
  %595 = vmatmul.mubr.f32.gmra.mrb[0].mxu0 %v529
  %v596 = vpop.f32.mrb[0].mxu0
  %v597 = vadd.f32 0.0, %v596
  %v598 = vpop.f32.mrb[0].mxu0
  %599 = vdwg.mxu0
  %v600 = vadd.f32 %v528, %v597
  %601 = vst [vmem:[#allocation2] sm:$0xff] %v600
  // Predicated region
  $region38: #{gcn_regression_forward.5} parent=0 // pred_check
    %p602 = pneg %p30
  $region39: #{gcn_regression_forward.5} parent=0 // pred_check_branch
    %604 = sbr.rel (%p602) target = $region41
  $region40: #{gcn_regression_forward.5} parent=0 // pred_region
    %v605 = vld [vmem:[#allocation2] sm:$0xff]
    %v606 = vld [vmem:[%s6] sm:$0xff]
    %v607 = vld [vmem:[%s6 + $0x8] sm:$0xff]
    %v608 = vld [vmem:[%s6 + $0x10] sm:$0xff]
    %v609 = vld [vmem:[%s6 + $0x18] sm:$0xff]
    %v610 = vld [vmem:[%s6 + $0x20] sm:$0xff]
    %v611 = vld [vmem:[%s6 + $0x28] sm:$0xff]
    %v612 = vld [vmem:[%s6 + $0x30] sm:$0xff]
    %v613 = vld [vmem:[%s6 + $0x38] sm:$0xff]
    %v614 = vld [vmem:[%s6 + $0x40] sm:$0xff]
    %v615 = vld [vmem:[%s6 + $0x48] sm:$0xff]
    %v616 = vld [vmem:[%s6 + $0x50] sm:$0xff]
    %v617 = vld [vmem:[%s6 + $0x58] sm:$0xff]
    %v618 = vld [vmem:[%s6 + $0x60] sm:$0xff]
    %v619 = vld [vmem:[%s6 + $0x68] sm:$0xff]
    %v620 = vld [vmem:[%s6 + $0x70] sm:$0xff]
    %v621 = vld [vmem:[%s6 + $0x78] sm:$0xff]
    %v622 = vld [vmem:[%s7] sm:$0x1]
    %v624 = vlaneseq
    %v625 = vshrl.u32 %v624, 7
    %v626 = vsub.s32 0, %v625
    %v627 = vrot.slane %v622, %v626
    %629 = vmatprep.subr.mxu0 0.0
    %630 = vmatpush1.msra.mxu0 %v606
    %631 = vmatprep.subr.mxu0 0.0
    %632 = vmatpush1.msra.mxu0 %v607
    %633 = vmatprep.subr.mxu0 0.0
    %634 = vmatpush1.msra.mxu0 %v608
    %635 = vmatprep.subr.mxu0 0.0
    %636 = vmatpush1.msra.mxu0 %v609
    %637 = vmatprep.subr.mxu0 0.0
    %638 = vmatpush1.msra.mxu0 %v610
    %639 = vmatprep.subr.mxu0 0.0
    %640 = vmatpush1.msra.mxu0 %v611
    %641 = vmatprep.subr.mxu0 0.0
    %642 = vmatpush1.msra.mxu0 %v612
    %643 = vmatprep.subr.mxu0 0.0
    %644 = vmatpush1.msra.mxu0 %v613
    %645 = vmatprep.subr.mxu0 0.0
    %646 = vmatpush1.msra.mxu0 %v614
    %647 = vmatprep.subr.mxu0 0.0
    %648 = vmatpush1.msra.mxu0 %v615
    %649 = vmatprep.subr.mxu0 0.0
    %650 = vmatpush1.msra.mxu0 %v616
    %651 = vmatprep.subr.mxu0 0.0
    %652 = vmatpush1.msra.mxu0 %v617
    %653 = vmatprep.subr.mxu0 0.0
    %654 = vmatpush1.msra.mxu0 %v618
    %655 = vmatprep.subr.mxu0 0.0
    %656 = vmatpush1.msra.mxu0 %v619
    %657 = vmatprep.subr.mxu0 0.0
    %658 = vmatpush1.msra.mxu0 %v620
    %659 = vmatprep.subr.mxu0 0.0
    %660 = vmatpush1.msra.mxu0 %v621
    %661 = vmatprep.subr.mxu0 0.0
    %662 = vmatpush1.msra.mxu0 0.0
    %663 = vmatprep.subr.mxu0 0.0
    %664 = vmatpush1.msra.mxu0 0.0
    %665 = vmatprep.subr.mxu0 0.0
    %666 = vmatpush1.msra.mxu0 0.0
    %667 = vmatprep.subr.mxu0 0.0
    %668 = vmatpush1.msra.mxu0 0.0
    %669 = vmatprep.subr.mxu0 0.0
    %670 = vmatpush1.msra.mxu0 0.0
    %671 = vmatprep.subr.mxu0 0.0
    %672 = vmatpush1.msra.mxu0 0.0
    %673 = vmatprep.subr.mxu0 0.0
    %674 = vmatpush1.msra.mxu0 0.0
    %675 = vmatprep.subr.mxu0 0.0
    %676 = vmatpush1.msra.mxu0 0.0
    %677 = vmatprep.subr.mxu0 0.0
    %678 = vmatpush1.msra.mxu0 0.0
    %679 = vmatprep.subr.mxu0 0.0
    %680 = vmatpush1.msra.mxu0 0.0
    %681 = vmatprep.subr.mxu0 0.0
    %682 = vmatpush1.msra.mxu0 0.0
    %683 = vmatprep.subr.mxu0 0.0
    %684 = vmatpush1.msra.mxu0 0.0
    %685 = vmatprep.subr.mxu0 0.0
    %686 = vmatpush1.msra.mxu0 0.0
    %687 = vmatprep.subr.mxu0 0.0
    %688 = vmatpush1.msra.mxu0 0.0
    %689 = vmatprep.subr.mxu0 0.0
    %690 = vmatpush1.msra.mxu0 0.0
    %691 = vmatprep.subr.mxu0 0.0
    %692 = vmatpush1.msra.mxu0 0.0
    %693 = vmatprep.mubr.f32.mxu0 0.0
    %694 = vmatmul.mubr.f32.gmra.mrb[0].mxu0 %v605
    %v695 = vpop.f32.mrb[0].mxu0
    %v696 = vadd.f32 %v627, %v695
    %v697 = vpop.f32.mrb[0].mxu0
    %698 = vdwg.mxu0
    %699 = vst [vmem:[%s8] sm:$0xff] %v696
  $region41: #{gcn_regression_forward.5} parent=0 // pred_fallthru
    _
  // Predicated region
  $region42: #{gcn_regression_forward.5} parent=0 // pred_check
    _
  $region43: #{gcn_regression_forward.5} parent=0 // pred_check_branch
    %701 = sbr.rel (0) target = $region45
  $region44: #{gcn_regression_forward.5} parent=0 // pred_region
    _
  $region45: #{gcn_regression_forward.5} parent=0 // pred_fallthru
    _
  // Predicated region
  $region46: #{gcn_regression_forward.5} parent=0 // pred_check
    _
  $region47: #{gcn_regression_forward.5} parent=0 // pred_check_branch
    %703 = sbr.rel (0) target = $region49
  $region48: #{gcn_regression_forward.5} parent=0 // pred_region
    _
  $region49: #{gcn_regression_forward.5} parent=0 // pred_fallthru
    _

</llo_original>
